<compile_context>
chip_gen: v7x
topology: tpu7x:2x2x1
jax: 0.10.0
libtpu: 0.0.40
codegen_flags: <defaults>
</compile_context>

<pallas_src>
import math

import jax
import jax.numpy as jnp
from jax.experimental import pallas as pl
from jax.experimental.pallas import tpu as pltpu


def _make_mha_kernel(num_heads, head_dim, block_b, F, T, Hm):
    D = num_heads * head_dim
    scale = 1.0 / math.sqrt(head_dim)

    def kernel(q_ref, k_ref, v_ref, bias_ref,
               wq_ref, bq_ref, wk_ref, bk_ref,
               wv_ref, bv_ref, wo_ref, bo_ref,
               o_ref,
               qp_s, kp_s, vp_s, ctx_s):
        cdt = q_ref.dtype  # MXU operand dtype (bf16 when the wrapper downcasts)

        # ---- Dense Q/K/V projections on folded (block_b*L, D) operands -----
        # Folding batch into M gives the MXU tall GEMMs instead of M = F rows.
        q2 = q_ref[...].reshape(block_b * F, D)
        k2 = k_ref[...].reshape(block_b * T, D)
        v2 = v_ref[...].reshape(block_b * T, D)

        qp = jnp.dot(q2, wq_ref[...], preferred_element_type=jnp.float32) + bq_ref[...]
        qp = qp * scale  # fold 1/sqrt(head_dim) once into Q (not per-head on [F,T])
        kp = jnp.dot(k2, wk_ref[...], preferred_element_type=jnp.float32) + bk_ref[...]
        vp = jnp.dot(v2, wv_ref[...], preferred_element_type=jnp.float32) + bv_ref[...]

        # Stage the projections in VMEM scratch once: bounds vreg live ranges
        # and makes the per-head slices below cheap ref loads instead of
        # lane-relayouts of live values.
        qp_s[...] = qp.reshape(block_b, F, D).astype(cdt)
        kp_s[...] = kp.reshape(block_b, T, D).astype(cdt)
        vp_s[...] = vp.reshape(block_b, T, D).astype(cdt)

        # Additive mask bias, precomputed f32 (-1e12 at masked positions).
        bias4 = bias_ref[...]                          # [block_b, Hm, Fm, T]
        bias_shared = bias4[:, 0] if Hm == 1 else None  # hoisted out of head loop

        for h in range(num_heads):                     # unrolled, static trip count
            lo, hi = h * head_dim, (h + 1) * head_dim
            qh = qp_s[:, :, lo:hi]                     # [bb, F, N]  (ref slice)
            kh = kp_s[:, :, lo:hi]                     # [bb, T, N]
            vh = vp_s[:, :, lo:hi]                     # [bb, T, N]
            bias_h = bias_shared if Hm == 1 else bias4[:, h]

            s = jnp.einsum("bfn,btn->bft", qh, kh,
                           preferred_element_type=jnp.float32)
            s = s + bias_h                             # broadcasts over F if Fm == 1

            m = jnp.max(s, axis=-1, keepdims=True)
            e = jnp.exp(s - m)
            denom = jnp.sum(e, axis=-1, keepdims=True)

            # Unnormalized context; normalize the N-wide result with an EUP
            # reciprocal (fewer VPU multiplies than scaling the T-wide probs).
            ctx = jnp.einsum("bft,btn->bfn", e.astype(cdt), vh,
                             preferred_element_type=jnp.float32)
            ctx = ctx * pl.reciprocal(denom, approx=True)

            # Lane-offset store builds the head-concat layout without a concat
            # and without a per-head under-filled output GEMM.
            ctx_s[:, :, lo:hi] = ctx.astype(cdt)

        # ---- Single full-depth (K = D) output projection GEMM --------------
        out = jnp.dot(ctx_s[...].reshape(block_b * F, D), wo_ref[...],
                      preferred_element_type=jnp.float32) + bo_ref[...]
        o_ref[...] = out.reshape(block_b, F, D).astype(o_ref.dtype)

    return kernel


def _pick_block_b(B, F, T):
    # Keep at least 2 grid steps when the batch allows it (v7x has two
    # TensorCores and the batch axis is the only "parallel" grid axis); within
    # that cap, grow block_b so the folded projection GEMMs see up to ~1024
    # rows (amortizes the ~0.35 us per-grid-step overhead on v5e/v6e).
    max_bb = B if B < 2 else max(1, B // 2)
    best = 1
    for d in range(1, max_bb + 1):
        if B % d == 0 and d * max(F, T) <= 1024:
            best = d
    return best


def multi_head_attention(q, k, v, masks, params, *, num_heads, head_dim,
                         block_b=None, compute_dtype=None):
    """Pallas implementation of MultiHeadAttention.forward (eval mode).

    q: [B, F, D]; k, v: [B, T, D]
    masks: None, [B, F] (F == T), [B, F, T], or 4-D broadcastable (per-head ok).
    params: wq/wk/wv/wo [D, D] (x @ W layout), bq/bk/bv/bo [1, D] (or [D]).
    """
    B, F, D = q.shape
    T = k.shape[1]
    assert D == num_heads * head_dim
    assert k.shape == v.shape
    out_dtype = q.dtype

    # MXU operands go through bf16 (f32 through the MXU is a slow multi-pass
    # path on every TPU generation); accumulation stays f32.
    if compute_dtype is None:
        compute_dtype = jnp.bfloat16 if q.dtype == jnp.float32 else q.dtype

    # --- compact additive mask bias (no F / head broadcast in HBM) ----------
    if masks is None:
        bias = jnp.zeros((B, 1, 1, T), jnp.float32)
    else:
        m = masks
        assert 2 <= m.ndim <= 4
        if m.ndim == 2:
            m = m[:, None, None, :]
        elif m.ndim == 3:
            m = m[:, None, :, :]
        bias = jnp.where(m == 0, jnp.float32(-1000000000000.0), jnp.float32(0.0))
        bias = jnp.broadcast_to(bias, m.shape[:3] + (T,))
    _, Hm, Fm, _ = bias.shape
    assert Hm in (1, num_heads) and Fm in (1, F)

    if block_b is None:
        block_b = _pick_block_b(B, F, T)
    assert B % block_b == 0

    # --- cast MXU operands; biases stay f32 for the accumulator adds --------
    qc = q.astype(compute_dtype)
    kc = k.astype(compute_dtype)
    vc = v.astype(compute_dtype)
    wq = params["wq"].astype(compute_dtype)
    wk = params["wk"].astype(compute_dtype)
    wv = params["wv"].astype(compute_dtype)
    wo = params["wo"].astype(compute_dtype)
    bq = params["bq"].astype(jnp.float32).reshape(1, D)
    bk = params["bk"].astype(jnp.float32).reshape(1, D)
    bv = params["bv"].astype(jnp.float32).reshape(1, D)
    bo = params["bo"].astype(jnp.float32).reshape(1, D)

    kernel = _make_mha_kernel(num_heads, head_dim, block_b, F, T, Hm)

    # Constant index map -> Pallas keeps weights resident across grid steps;
    # single-buffer them so they don't take 2x VMEM (block index never changes).
    def wspec(shape):
        return pl.BlockSpec(shape, lambda b: (0,) * len(shape),
                            pipeline_mode=pl.Buffered(1))

    # --- explicit VMEM budget (headroom matters on v7x's 64 MiB VMEM) -------
    cbytes = jnp.dtype(compute_dtype).itemsize
    obytes = jnp.dtype(out_dtype).itemsize
    act = 2 * (block_b * F * D + 2 * block_b * T * D) * cbytes   # q/k/v, 2x buffered
    msk = 2 * block_b * Hm * Fm * T * 4                          # mask bias, 2x buffered
    outb = 2 * block_b * F * D * obytes                          # output, 2x buffered
    wgt = 4 * D * D * cbytes + 4 * D * 4                         # weights+biases, 1x buffered
    scr = (2 * block_b * F * D + 2 * block_b * T * D) * cbytes   # qp/kp/vp/ctx scratch
    est = act + msk + outb + wgt + scr
    vmem_limit = int(min(48 << 20, max(32 << 20, 2 * est)))

    return pl.pallas_call(
        kernel,
        out_shape=jax.ShapeDtypeStruct((B, F, D), out_dtype),
        grid_spec=pltpu.PrefetchScalarGridSpec(
            num_scalar_prefetch=0,
            grid=(B // block_b,),
            in_specs=[
                pl.BlockSpec((block_b, F, D), lambda b: (b, 0, 0)),          # q
                pl.BlockSpec((block_b, T, D), lambda b: (b, 0, 0)),          # k
                pl.BlockSpec((block_b, T, D), lambda b: (b, 0, 0)),          # v
                pl.BlockSpec((block_b, Hm, Fm, T), lambda b: (b, 0, 0, 0)),  # mask bias
                wspec((D, D)), wspec((1, D)),                                # wq, bq
                wspec((D, D)), wspec((1, D)),                                # wk, bk
                wspec((D, D)), wspec((1, D)),                                # wv, bv
                wspec((D, D)), wspec((1, D)),                                # wo, bo
            ],
            out_specs=pl.BlockSpec((block_b, F, D), lambda b: (b, 0, 0)),
            scratch_shapes=[
                pltpu.VMEM((block_b, F, D), compute_dtype),   # qp staging
                pltpu.VMEM((block_b, T, D), compute_dtype),   # kp staging
                pltpu.VMEM((block_b, T, D), compute_dtype),   # vp staging
                pltpu.VMEM((block_b, F, D), compute_dtype),   # per-head context staging
            ],
        ),
        compiler_params=pltpu.CompilerParams(
            dimension_semantics=("parallel",),
            vmem_limit_bytes=vmem_limit),
    )(qc, kc, vc, bias, wq, bq, wk, bk, wv, bv, wo, bo)


def _reference(q, k, v, masks, params, *, num_heads, head_dim):
    """Pure-JAX f32 reference mirroring the PyTorch forward (eval mode)."""
    B, F, D = q.shape
    T = k.shape[1]
    if masks.ndim == 2:
        m = masks[:, None, None, :]
    elif masks.ndim == 3:
        m = masks[:, None, :, :]
    else:
        m = masks
    qp = q @ params["wq"] + params["bq"]
    kp = k @ params["wk"] + params["bk"]
    vp = v @ params["wv"] + params["bv"]
    qh = qp.reshape(B, F, num_heads, head_dim).transpose(0, 2, 1, 3)
    kh = kp.reshape(B, T, num_heads, head_dim).transpose(0, 2, 1, 3)
    vh = vp.reshape(B, T, num_heads, head_dim).transpose(0, 2, 1, 3)
    a = jnp.einsum("bhfn,bhtn->bhft", qh, kh) / math.sqrt(head_dim)
    a = jnp.where(m == 0, -1000000000000.0, a)
    a = jax.nn.softmax(a, axis=-1)
    o = jnp.einsum("bhft,bhtn->bhfn", a, vh)
    o = o.transpose(0, 2, 1, 3).reshape(B, F, D)
    return o @ params["wo"] + params["bo"]


if __name__ == "__main__":
    # Small config: num_attention_heads=4, hidden_size_per_head=32 -> hidden=128
    H, N = 4, 32
    D = H * N
    B, F, T = 2, 8, 8

    key = jax.random.PRNGKey(0)
    keys = jax.random.split(key, 14)

    bound = 1.0 / math.sqrt(D)
    params = {
        "wq": jax.random.uniform(keys[0], (D, D), jnp.float32, -bound, bound),
        "bq": jax.random.uniform(keys[1], (1, D), jnp.float32, -bound, bound),
        "wk": jax.random.uniform(keys[2], (D, D), jnp.float32, -bound, bound),
        "bk": jax.random.uniform(keys[3], (1, D), jnp.float32, -bound, bound),
        "wv": jax.random.uniform(keys[4], (D, D), jnp.float32, -bound, bound),
        "bv": jax.random.uniform(keys[5], (1, D), jnp.float32, -bound, bound),
        "wo": jax.random.uniform(keys[6], (D, D), jnp.float32, -bound, bound),
        "bo": jax.random.uniform(keys[7], (1, D), jnp.float32, -bound, bound),
    }

    q = jax.random.normal(keys[8], (B, F, D), jnp.float32)
    k = jax.random.normal(keys[9], (B, T, D), jnp.float32)
    v = jax.random.normal(keys[10], (B, T, D), jnp.float32)
    # Binary [B, F] mask (0 = masked) to exercise the masked_fill path.
    masks2d = (jax.random.uniform(keys[11], (B, F)) > 0.3).astype(jnp.float32)

    out = multi_head_attention(q, k, v, masks2d, params, num_heads=H, head_dim=N)
    out = jax.block_until_ready(out)
    ref = _reference(q, k, v, masks2d, params, num_heads=H, head_dim=N)
    assert out.shape == (B, F, D)
    # bf16 MXU operands (f32 accumulate) + approx reciprocal -> ~1e-2 abs error
    # budget against the pure-f32 reference.
    assert jnp.allclose(out, ref, atol=3e-2, rtol=3e-2), \
        f"self-attn max abs diff {jnp.max(jnp.abs(out - ref))}"

    # Cross-attention path (F != T) with a [B, F, T] mask.
    T2 = 16
    k2 = jax.random.normal(keys[12], (B, T2, D), jnp.float32)
    v2 = jax.random.normal(keys[13], (B, T2, D), jnp.float32)
    masks3d = (jax.random.uniform(keys[11], (B, F, T2)) > 0.3).astype(jnp.float32)

    out2 = multi_head_attention(q, k2, v2, masks3d, params, num_heads=H, head_dim=N)
    out2 = jax.block_until_ready(out2)
    ref2 = _reference(q, k2, v2, masks3d, params, num_heads=H, head_dim=N)
    assert out2.shape == (B, F, D)
    assert jnp.allclose(out2, ref2, atol=3e-2, rtol=3e-2), \
        f"cross-attn max abs diff {jnp.max(jnp.abs(out2 - ref2))}"

    print("KERNEL_OK")
</pallas_src>

<mosaic_0001>
module attributes {stable_mosaic.version = 11 : i64} {
  func.func @kernel(%arg0: i32, %arg1: memref<1x8x128xbf16, #tpu.memory_space<vmem>>, %arg2: memref<1x8x128xbf16, #tpu.memory_space<vmem>>, %arg3: memref<1x8x128xbf16, #tpu.memory_space<vmem>>, %arg4: memref<1x1x1x8xf32, #tpu.memory_space<vmem>>, %arg5: memref<128x128xbf16, #tpu.memory_space<vmem>>, %arg6: memref<1x128xf32, #tpu.memory_space<vmem>>, %arg7: memref<128x128xbf16, #tpu.memory_space<vmem>>, %arg8: memref<1x128xf32, #tpu.memory_space<vmem>>, %arg9: memref<128x128xbf16, #tpu.memory_space<vmem>>, %arg10: memref<1x128xf32, #tpu.memory_space<vmem>>, %arg11: memref<128x128xbf16, #tpu.memory_space<vmem>>, %arg12: memref<1x128xf32, #tpu.memory_space<vmem>>, %arg13: memref<1x8x128xf32, #tpu.memory_space<vmem>>, %arg14: memref<1x8x128xbf16, #tpu.memory_space<vmem>>, %arg15: memref<1x8x128xbf16, #tpu.memory_space<vmem>>, %arg16: memref<1x8x128xbf16, #tpu.memory_space<vmem>>, %arg17: memref<1x8x128xbf16, #tpu.memory_space<vmem>>) attributes {dimension_semantics = [#tpu.dimension_semantics<parallel>], iteration_bounds = array<i64: 2>, scalar_prefetch = 0 : i64, scratch_operands = 4 : i64, tpu.core_type = #tpu.core_type<tc>, window_params = [{transform_indices = @transform_0, window_bounds = array<i64: 1, 8, 128>}, {transform_indices = @transform_1, window_bounds = array<i64: 1, 8, 128>}, {transform_indices = @transform_2, window_bounds = array<i64: 1, 8, 128>}, {transform_indices = @transform_3, window_bounds = array<i64: 1, 1, 1, 8>}, {pipeline_mode = #tpu.pipeline_mode<synchronous>, transform_indices = @transform_4, window_bounds = array<i64: 128, 128>}, {pipeline_mode = #tpu.pipeline_mode<synchronous>, transform_indices = @transform_5, window_bounds = array<i64: 1, 128>}, {pipeline_mode = #tpu.pipeline_mode<synchronous>, transform_indices = @transform_6, window_bounds = array<i64: 128, 128>}, {pipeline_mode = #tpu.pipeline_mode<synchronous>, transform_indices = @transform_7, window_bounds = array<i64: 1, 128>}, {pipeline_mode = #tpu.pipeline_mode<synchronous>, transform_indices = @transform_8, window_bounds = array<i64: 128, 128>}, {pipeline_mode = #tpu.pipeline_mode<synchronous>, transform_indices = @transform_9, window_bounds = array<i64: 1, 128>}, {pipeline_mode = #tpu.pipeline_mode<synchronous>, transform_indices = @transform_10, window_bounds = array<i64: 128, 128>}, {pipeline_mode = #tpu.pipeline_mode<synchronous>, transform_indices = @transform_11, window_bounds = array<i64: 1, 128>}, {transform_indices = @transform_12, window_bounds = array<i64: 1, 8, 128>}]} {
    %c0 = arith.constant 0 : index
    %c0_0 = arith.constant 0 : index
    %c0_1 = arith.constant 0 : index
    %0 = vector.load %arg1[%c0, %c0_0, %c0_1] : memref<1x8x128xbf16, #tpu.memory_space<vmem>>, vector<1x8x128xbf16>
    %1 = vector.shape_cast %0 : vector<1x8x128xbf16> to vector<8x128xbf16>
    %c0_2 = arith.constant 0 : index
    %c0_3 = arith.constant 0 : index
    %c0_4 = arith.constant 0 : index
    %2 = vector.load %arg2[%c0_2, %c0_3, %c0_4] : memref<1x8x128xbf16, #tpu.memory_space<vmem>>, vector<1x8x128xbf16>
    %3 = vector.shape_cast %2 : vector<1x8x128xbf16> to vector<8x128xbf16>
    %c0_5 = arith.constant 0 : index
    %c0_6 = arith.constant 0 : index
    %c0_7 = arith.constant 0 : index
    %4 = vector.load %arg3[%c0_5, %c0_6, %c0_7] : memref<1x8x128xbf16, #tpu.memory_space<vmem>>, vector<1x8x128xbf16>
    %5 = vector.shape_cast %4 : vector<1x8x128xbf16> to vector<8x128xbf16>
    %c0_8 = arith.constant 0 : index
    %c0_9 = arith.constant 0 : index
    %6 = vector.load %arg5[%c0_8, %c0_9] : memref<128x128xbf16, #tpu.memory_space<vmem>>, vector<128x128xbf16>
    %cst = arith.constant dense<0.000000e+00> : vector<8x128xf32>
    %7 = tpu.matmul %1, %6, %cst {dimension_numbers = #tpu.dot_dimension_numbers<[1], [0], [0], [1], [0, 0, 1, 1], [], []>} : vector<8x128xbf16>, vector<128x128xbf16>, vector<8x128xf32> -> vector<8x128xf32>
    %c0_10 = arith.constant 0 : index
    %c0_11 = arith.constant 0 : index
    %8 = vector.load %arg6[%c0_10, %c0_11] : memref<1x128xf32, #tpu.memory_space<vmem>>, vector<1x128xf32>
    %9 = vector.broadcast %8 : vector<1x128xf32> to vector<8x128xf32>
    %10 = arith.addf %7, %9 : vector<8x128xf32>
    %cst_12 = arith.constant 0.176776692 : f32
    %11 = vector.broadcast %cst_12 : f32 to vector<8x128xf32>
    %12 = arith.mulf %10, %11 : vector<8x128xf32>
    %c0_13 = arith.constant 0 : index
    %c0_14 = arith.constant 0 : index
    %13 = vector.load %arg7[%c0_13, %c0_14] : memref<128x128xbf16, #tpu.memory_space<vmem>>, vector<128x128xbf16>
    %cst_15 = arith.constant dense<0.000000e+00> : vector<8x128xf32>
    %14 = tpu.matmul %3, %13, %cst_15 {dimension_numbers = #tpu.dot_dimension_numbers<[1], [0], [0], [1], [0, 0, 1, 1], [], []>} : vector<8x128xbf16>, vector<128x128xbf16>, vector<8x128xf32> -> vector<8x128xf32>
    %c0_16 = arith.constant 0 : index
    %c0_17 = arith.constant 0 : index
    %15 = vector.load %arg8[%c0_16, %c0_17] : memref<1x128xf32, #tpu.memory_space<vmem>>, vector<1x128xf32>
    %16 = vector.broadcast %15 : vector<1x128xf32> to vector<8x128xf32>
    %17 = arith.addf %14, %16 : vector<8x128xf32>
    %c0_18 = arith.constant 0 : index
    %c0_19 = arith.constant 0 : index
    %18 = vector.load %arg9[%c0_18, %c0_19] : memref<128x128xbf16, #tpu.memory_space<vmem>>, vector<128x128xbf16>
    %cst_20 = arith.constant dense<0.000000e+00> : vector<8x128xf32>
    %19 = tpu.matmul %5, %18, %cst_20 {dimension_numbers = #tpu.dot_dimension_numbers<[1], [0], [0], [1], [0, 0, 1, 1], [], []>} : vector<8x128xbf16>, vector<128x128xbf16>, vector<8x128xf32> -> vector<8x128xf32>
    %c0_21 = arith.constant 0 : index
    %c0_22 = arith.constant 0 : index
    %20 = vector.load %arg10[%c0_21, %c0_22] : memref<1x128xf32, #tpu.memory_space<vmem>>, vector<1x128xf32>
    %21 = vector.broadcast %20 : vector<1x128xf32> to vector<8x128xf32>
    %22 = arith.addf %19, %21 : vector<8x128xf32>
    %23 = vector.shape_cast %12 : vector<8x128xf32> to vector<1x8x128xf32>
    %24 = arith.truncf %23 : vector<1x8x128xf32> to vector<1x8x128xbf16>
    %c0_23 = arith.constant 0 : index
    %c0_24 = arith.constant 0 : index
    %c0_25 = arith.constant 0 : index
    %25 = vector.load %arg14[%c0_23, %c0_24, %c0_25] : memref<1x8x128xbf16, #tpu.memory_space<vmem>>, vector<1x8x128xbf16>
    tpu.vector_store %arg14[%c0_23, %c0_24, %c0_25], %24 {strides = array<i32>} : memref<1x8x128xbf16, #tpu.memory_space<vmem>>, vector<1x8x128xbf16>,
    %26 = vector.shape_cast %17 : vector<8x128xf32> to vector<1x8x128xf32>
    %27 = arith.truncf %26 : vector<1x8x128xf32> to vector<1x8x128xbf16>
    %c0_26 = arith.constant 0 : index
    %c0_27 = arith.constant 0 : index
    %c0_28 = arith.constant 0 : index
    %28 = vector.load %arg15[%c0_26, %c0_27, %c0_28] : memref<1x8x128xbf16, #tpu.memory_space<vmem>>, vector<1x8x128xbf16>
    tpu.vector_store %arg15[%c0_26, %c0_27, %c0_28], %27 {strides = array<i32>} : memref<1x8x128xbf16, #tpu.memory_space<vmem>>, vector<1x8x128xbf16>,
    %29 = vector.shape_cast %22 : vector<8x128xf32> to vector<1x8x128xf32>
    %30 = arith.truncf %29 : vector<1x8x128xf32> to vector<1x8x128xbf16>
    %c0_29 = arith.constant 0 : index
    %c0_30 = arith.constant 0 : index
    %c0_31 = arith.constant 0 : index
    %31 = vector.load %arg16[%c0_29, %c0_30, %c0_31] : memref<1x8x128xbf16, #tpu.memory_space<vmem>>, vector<1x8x128xbf16>
    tpu.vector_store %arg16[%c0_29, %c0_30, %c0_31], %30 {strides = array<i32>} : memref<1x8x128xbf16, #tpu.memory_space<vmem>>, vector<1x8x128xbf16>,
    %c0_32 = arith.constant 0 : index
    %c0_33 = arith.constant 0 : index
    %c0_34 = arith.constant 0 : index
    %c0_35 = arith.constant 0 : index
    %32 = vector.load %arg4[%c0_32, %c0_33, %c0_34, %c0_35] : memref<1x1x1x8xf32, #tpu.memory_space<vmem>>, vector<1x1x1x8xf32>
    %33 = vector.shape_cast %32 : vector<1x1x1x8xf32> to vector<1x1x8xf32>
    %c0_36 = arith.constant 0 : index
    %c0_37 = arith.constant 0 : index
    %c0_38 = arith.constant 0 : index
    %34 = vector.load %arg14[%c0_36, %c0_37, %c0_38] : memref<1x8x128xbf16, #tpu.memory_space<vmem>>, vector<1x8x32xbf16>
    %c0_39 = arith.constant 0 : index
    %c0_40 = arith.constant 0 : index
    %c0_41 = arith.constant 0 : index
    %35 = vector.load %arg15[%c0_39, %c0_40, %c0_41] : memref<1x8x128xbf16, #tpu.memory_space<vmem>>, vector<1x8x32xbf16>
    %c0_42 = arith.constant 0 : index
    %c0_43 = arith.constant 0 : index
    %c0_44 = arith.constant 0 : index
    %36 = vector.load %arg16[%c0_42, %c0_43, %c0_44] : memref<1x8x128xbf16, #tpu.memory_space<vmem>>, vector<1x8x32xbf16>
    "tpu.trace_start"() <{level = 10 : i32, message = "bfn,btn->bft"}> : () -> ()
    %cst_45 = arith.constant dense<0.000000e+00> : vector<1x8x8xf32>
    %37 = tpu.matmul %34, %35, %cst_45 {dimension_numbers = #tpu.dot_dimension_numbers<[2], [2], [1], [1], [0, 0, 0, 1, 1, 1], [0], [0]>} : vector<1x8x32xbf16>, vector<1x8x32xbf16>, vector<1x8x8xf32> -> vector<1x8x8xf32>
    "tpu.trace_stop"() : () -> ()
    %38 = vector.broadcast %33 : vector<1x1x8xf32> to vector<1x8x8xf32>
    %39 = arith.addf %37, %38 : vector<1x8x8xf32>
    %cst_46 = arith.constant dense<0xFF800000> : vector<1x8xf32>
    %40 = vector.multi_reduction <maximumf>, %39, %cst_46 [2] : vector<1x8x8xf32> to vector<1x8xf32>
    %41 = vector.shape_cast %40 : vector<1x8xf32> to vector<1x8x1xf32>
    %42 = vector.broadcast %41 : vector<1x8x1xf32> to vector<1x8x8xf32>
    %43 = arith.subf %39, %42 : vector<1x8x8xf32>
    %44 = math.exp %43 : vector<1x8x8xf32>
    %cst_47 = arith.constant dense<0.000000e+00> : vector<1x8xf32>
    %45 = vector.multi_reduction <add>, %44, %cst_47 [2] : vector<1x8x8xf32> to vector<1x8xf32>
    %46 = vector.shape_cast %45 : vector<1x8xf32> to vector<1x8x1xf32>
    %47 = arith.truncf %44 : vector<1x8x8xf32> to vector<1x8x8xbf16>
    "tpu.trace_start"() <{level = 10 : i32, message = "bft,btn->bfn"}> : () -> ()
    %cst_48 = arith.constant dense<0.000000e+00> : vector<1x8x32xf32>
    %48 = tpu.matmul %47, %36, %cst_48 {dimension_numbers = #tpu.dot_dimension_numbers<[2], [1], [1], [2], [0, 0, 0, 1, 1, 2], [0], [0]>} : vector<1x8x8xbf16>, vector<1x8x32xbf16>, vector<1x8x32xf32> -> vector<1x8x32xf32>
    "tpu.trace_stop"() : () -> ()
    %49 = tpu.reciprocal %46 {approx = true} : vector<1x8x1xf32> -> vector<1x8x1xf32>
    %50 = vector.broadcast %49 : vector<1x8x1xf32> to vector<1x8x32xf32>
    %51 = arith.mulf %48, %50 : vector<1x8x32xf32>
    %52 = arith.truncf %51 : vector<1x8x32xf32> to vector<1x8x32xbf16>
    %c0_49 = arith.constant 0 : index
    %c0_50 = arith.constant 0 : index
    %c0_51 = arith.constant 0 : index
    %53 = vector.load %arg17[%c0_49, %c0_50, %c0_51] : memref<1x8x128xbf16, #tpu.memory_space<vmem>>, vector<1x8x32xbf16>
    tpu.vector_store %arg17[%c0_49, %c0_50, %c0_51], %52 {strides = array<i32>} : memref<1x8x128xbf16, #tpu.memory_space<vmem>>, vector<1x8x32xbf16>,
    %c0_52 = arith.constant 0 : index
    %c0_53 = arith.constant 0 : index
    %c32 = arith.constant 32 : index
    %54 = vector.load %arg14[%c0_52, %c0_53, %c32] : memref<1x8x128xbf16, #tpu.memory_space<vmem>>, vector<1x8x32xbf16>
    %c0_54 = arith.constant 0 : index
    %c0_55 = arith.constant 0 : index
    %c32_56 = arith.constant 32 : index
    %55 = vector.load %arg15[%c0_54, %c0_55, %c32_56] : memref<1x8x128xbf16, #tpu.memory_space<vmem>>, vector<1x8x32xbf16>
    %c0_57 = arith.constant 0 : index
    %c0_58 = arith.constant 0 : index
    %c32_59 = arith.constant 32 : index
    %56 = vector.load %arg16[%c0_57, %c0_58, %c32_59] : memref<1x8x128xbf16, #tpu.memory_space<vmem>>, vector<1x8x32xbf16>
    "tpu.trace_start"() <{level = 10 : i32, message = "bfn,btn->bft"}> : () -> ()
    %cst_60 = arith.constant dense<0.000000e+00> : vector<1x8x8xf32>
    %57 = tpu.matmul %54, %55, %cst_60 {dimension_numbers = #tpu.dot_dimension_numbers<[2], [2], [1], [1], [0, 0, 0, 1, 1, 1], [0], [0]>} : vector<1x8x32xbf16>, vector<1x8x32xbf16>, vector<1x8x8xf32> -> vector<1x8x8xf32>
    "tpu.trace_stop"() : () -> ()
    %58 = vector.broadcast %33 : vector<1x1x8xf32> to vector<1x8x8xf32>
    %59 = arith.addf %57, %58 : vector<1x8x8xf32>
    %cst_61 = arith.constant dense<0xFF800000> : vector<1x8xf32>
    %60 = vector.multi_reduction <maximumf>, %59, %cst_61 [2] : vector<1x8x8xf32> to vector<1x8xf32>
    %61 = vector.shape_cast %60 : vector<1x8xf32> to vector<1x8x1xf32>
    %62 = vector.broadcast %61 : vector<1x8x1xf32> to vector<1x8x8xf32>
    %63 = arith.subf %59, %62 : vector<1x8x8xf32>
    %64 = math.exp %63 : vector<1x8x8xf32>
    %cst_62 = arith.constant dense<0.000000e+00> : vector<1x8xf32>
    %65 = vector.multi_reduction <add>, %64, %cst_62 [2] : vector<1x8x8xf32> to vector<1x8xf32>
    %66 = vector.shape_cast %65 : vector<1x8xf32> to vector<1x8x1xf32>
    %67 = arith.truncf %64 : vector<1x8x8xf32> to vector<1x8x8xbf16>
    "tpu.trace_start"() <{level = 10 : i32, message = "bft,btn->bfn"}> : () -> ()
    %cst_63 = arith.constant dense<0.000000e+00> : vector<1x8x32xf32>
    %68 = tpu.matmul %67, %56, %cst_63 {dimension_numbers = #tpu.dot_dimension_numbers<[2], [1], [1], [2], [0, 0, 0, 1, 1, 2], [0], [0]>} : vector<1x8x8xbf16>, vector<1x8x32xbf16>, vector<1x8x32xf32> -> vector<1x8x32xf32>
    "tpu.trace_stop"() : () -> ()
    %69 = tpu.reciprocal %66 {approx = true} : vector<1x8x1xf32> -> vector<1x8x1xf32>
    %70 = vector.broadcast %69 : vector<1x8x1xf32> to vector<1x8x32xf32>
    %71 = arith.mulf %68, %70 : vector<1x8x32xf32>
    %72 = arith.truncf %71 : vector<1x8x32xf32> to vector<1x8x32xbf16>
    %c0_64 = arith.constant 0 : index
    %c0_65 = arith.constant 0 : index
    %c32_66 = arith.constant 32 : index
    %73 = vector.load %arg17[%c0_64, %c0_65, %c32_66] : memref<1x8x128xbf16, #tpu.memory_space<vmem>>, vector<1x8x32xbf16>
    tpu.vector_store %arg17[%c0_64, %c0_65, %c32_66], %72 {strides = array<i32>} : memref<1x8x128xbf16, #tpu.memory_space<vmem>>, vector<1x8x32xbf16>,
    %c0_67 = arith.constant 0 : index
    %c0_68 = arith.constant 0 : index
    %c64 = arith.constant 64 : index
    %74 = vector.load %arg14[%c0_67, %c0_68, %c64] : memref<1x8x128xbf16, #tpu.memory_space<vmem>>, vector<1x8x32xbf16>
    %c0_69 = arith.constant 0 : index
    %c0_70 = arith.constant 0 : index
    %c64_71 = arith.constant 64 : index
    %75 = vector.load %arg15[%c0_69, %c0_70, %c64_71] : memref<1x8x128xbf16, #tpu.memory_space<vmem>>, vector<1x8x32xbf16>
    %c0_72 = arith.constant 0 : index
    %c0_73 = arith.constant 0 : index
    %c64_74 = arith.constant 64 : index
    %76 = vector.load %arg16[%c0_72, %c0_73, %c64_74] : memref<1x8x128xbf16, #tpu.memory_space<vmem>>, vector<1x8x32xbf16>
    "tpu.trace_start"() <{level = 10 : i32, message = "bfn,btn->bft"}> : () -> ()
    %cst_75 = arith.constant dense<0.000000e+00> : vector<1x8x8xf32>
    %77 = tpu.matmul %74, %75, %cst_75 {dimension_numbers = #tpu.dot_dimension_numbers<[2], [2], [1], [1], [0, 0, 0, 1, 1, 1], [0], [0]>} : vector<1x8x32xbf16>, vector<1x8x32xbf16>, vector<1x8x8xf32> -> vector<1x8x8xf32>
    "tpu.trace_stop"() : () -> ()
    %78 = vector.broadcast %33 : vector<1x1x8xf32> to vector<1x8x8xf32>
    %79 = arith.addf %77, %78 : vector<1x8x8xf32>
    %cst_76 = arith.constant dense<0xFF800000> : vector<1x8xf32>
    %80 = vector.multi_reduction <maximumf>, %79, %cst_76 [2] : vector<1x8x8xf32> to vector<1x8xf32>
    %81 = vector.shape_cast %80 : vector<1x8xf32> to vector<1x8x1xf32>
    %82 = vector.broadcast %81 : vector<1x8x1xf32> to vector<1x8x8xf32>
    %83 = arith.subf %79, %82 : vector<1x8x8xf32>
    %84 = math.exp %83 : vector<1x8x8xf32>
    %cst_77 = arith.constant dense<0.000000e+00> : vector<1x8xf32>
    %85 = vector.multi_reduction <add>, %84, %cst_77 [2] : vector<1x8x8xf32> to vector<1x8xf32>
    %86 = vector.shape_cast %85 : vector<1x8xf32> to vector<1x8x1xf32>
    %87 = arith.truncf %84 : vector<1x8x8xf32> to vector<1x8x8xbf16>
    "tpu.trace_start"() <{level = 10 : i32, message = "bft,btn->bfn"}> : () -> ()
    %cst_78 = arith.constant dense<0.000000e+00> : vector<1x8x32xf32>
    %88 = tpu.matmul %87, %76, %cst_78 {dimension_numbers = #tpu.dot_dimension_numbers<[2], [1], [1], [2], [0, 0, 0, 1, 1, 2], [0], [0]>} : vector<1x8x8xbf16>, vector<1x8x32xbf16>, vector<1x8x32xf32> -> vector<1x8x32xf32>
    "tpu.trace_stop"() : () -> ()
    %89 = tpu.reciprocal %86 {approx = true} : vector<1x8x1xf32> -> vector<1x8x1xf32>
    %90 = vector.broadcast %89 : vector<1x8x1xf32> to vector<1x8x32xf32>
    %91 = arith.mulf %88, %90 : vector<1x8x32xf32>
    %92 = arith.truncf %91 : vector<1x8x32xf32> to vector<1x8x32xbf16>
    %c0_79 = arith.constant 0 : index
    %c0_80 = arith.constant 0 : index
    %c64_81 = arith.constant 64 : index
    %93 = vector.load %arg17[%c0_79, %c0_80, %c64_81] : memref<1x8x128xbf16, #tpu.memory_space<vmem>>, vector<1x8x32xbf16>
    tpu.vector_store %arg17[%c0_79, %c0_80, %c64_81], %92 {strides = array<i32>} : memref<1x8x128xbf16, #tpu.memory_space<vmem>>, vector<1x8x32xbf16>,
    %c0_82 = arith.constant 0 : index
    %c0_83 = arith.constant 0 : index
    %c96 = arith.constant 96 : index
    %94 = vector.load %arg14[%c0_82, %c0_83, %c96] : memref<1x8x128xbf16, #tpu.memory_space<vmem>>, vector<1x8x32xbf16>
    %c0_84 = arith.constant 0 : index
    %c0_85 = arith.constant 0 : index
    %c96_86 = arith.constant 96 : index
    %95 = vector.load %arg15[%c0_84, %c0_85, %c96_86] : memref<1x8x128xbf16, #tpu.memory_space<vmem>>, vector<1x8x32xbf16>
    %c0_87 = arith.constant 0 : index
    %c0_88 = arith.constant 0 : index
    %c96_89 = arith.constant 96 : index
    %96 = vector.load %arg16[%c0_87, %c0_88, %c96_89] : memref<1x8x128xbf16, #tpu.memory_space<vmem>>, vector<1x8x32xbf16>
    "tpu.trace_start"() <{level = 10 : i32, message = "bfn,btn->bft"}> : () -> ()
    %cst_90 = arith.constant dense<0.000000e+00> : vector<1x8x8xf32>
    %97 = tpu.matmul %94, %95, %cst_90 {dimension_numbers = #tpu.dot_dimension_numbers<[2], [2], [1], [1], [0, 0, 0, 1, 1, 1], [0], [0]>} : vector<1x8x32xbf16>, vector<1x8x32xbf16>, vector<1x8x8xf32> -> vector<1x8x8xf32>
    "tpu.trace_stop"() : () -> ()
    %98 = vector.broadcast %33 : vector<1x1x8xf32> to vector<1x8x8xf32>
    %99 = arith.addf %97, %98 : vector<1x8x8xf32>
    %cst_91 = arith.constant dense<0xFF800000> : vector<1x8xf32>
    %100 = vector.multi_reduction <maximumf>, %99, %cst_91 [2] : vector<1x8x8xf32> to vector<1x8xf32>
    %101 = vector.shape_cast %100 : vector<1x8xf32> to vector<1x8x1xf32>
    %102 = vector.broadcast %101 : vector<1x8x1xf32> to vector<1x8x8xf32>
    %103 = arith.subf %99, %102 : vector<1x8x8xf32>
    %104 = math.exp %103 : vector<1x8x8xf32>
    %cst_92 = arith.constant dense<0.000000e+00> : vector<1x8xf32>
    %105 = vector.multi_reduction <add>, %104, %cst_92 [2] : vector<1x8x8xf32> to vector<1x8xf32>
    %106 = vector.shape_cast %105 : vector<1x8xf32> to vector<1x8x1xf32>
    %107 = arith.truncf %104 : vector<1x8x8xf32> to vector<1x8x8xbf16>
    "tpu.trace_start"() <{level = 10 : i32, message = "bft,btn->bfn"}> : () -> ()
    %cst_93 = arith.constant dense<0.000000e+00> : vector<1x8x32xf32>
    %108 = tpu.matmul %107, %96, %cst_93 {dimension_numbers = #tpu.dot_dimension_numbers<[2], [1], [1], [2], [0, 0, 0, 1, 1, 2], [0], [0]>} : vector<1x8x8xbf16>, vector<1x8x32xbf16>, vector<1x8x32xf32> -> vector<1x8x32xf32>
    "tpu.trace_stop"() : () -> ()
    %109 = tpu.reciprocal %106 {approx = true} : vector<1x8x1xf32> -> vector<1x8x1xf32>
    %110 = vector.broadcast %109 : vector<1x8x1xf32> to vector<1x8x32xf32>
    %111 = arith.mulf %108, %110 : vector<1x8x32xf32>
    %112 = arith.truncf %111 : vector<1x8x32xf32> to vector<1x8x32xbf16>
    %c0_94 = arith.constant 0 : index
    %c0_95 = arith.constant 0 : index
    %c96_96 = arith.constant 96 : index
    %113 = vector.load %arg17[%c0_94, %c0_95, %c96_96] : memref<1x8x128xbf16, #tpu.memory_space<vmem>>, vector<1x8x32xbf16>
    tpu.vector_store %arg17[%c0_94, %c0_95, %c96_96], %112 {strides = array<i32>} : memref<1x8x128xbf16, #tpu.memory_space<vmem>>, vector<1x8x32xbf16>,
    %c0_97 = arith.constant 0 : index
    %c0_98 = arith.constant 0 : index
    %c0_99 = arith.constant 0 : index
    %114 = vector.load %arg17[%c0_97, %c0_98, %c0_99] : memref<1x8x128xbf16, #tpu.memory_space<vmem>>, vector<1x8x128xbf16>
    %115 = vector.shape_cast %114 : vector<1x8x128xbf16> to vector<8x128xbf16>
    %c0_100 = arith.constant 0 : index
    %c0_101 = arith.constant 0 : index
    %116 = vector.load %arg11[%c0_100, %c0_101] : memref<128x128xbf16, #tpu.memory_space<vmem>>, vector<128x128xbf16>
    %cst_102 = arith.constant dense<0.000000e+00> : vector<8x128xf32>
    %117 = tpu.matmul %115, %116, %cst_102 {dimension_numbers = #tpu.dot_dimension_numbers<[1], [0], [0], [1], [0, 0, 1, 1], [], []>} : vector<8x128xbf16>, vector<128x128xbf16>, vector<8x128xf32> -> vector<8x128xf32>
    %c0_103 = arith.constant 0 : index
    %c0_104 = arith.constant 0 : index
    %118 = vector.load %arg12[%c0_103, %c0_104] : memref<1x128xf32, #tpu.memory_space<vmem>>, vector<1x128xf32>
    %119 = vector.broadcast %118 : vector<1x128xf32> to vector<8x128xf32>
    %120 = arith.addf %117, %119 : vector<8x128xf32>
    %121 = vector.shape_cast %120 : vector<8x128xf32> to vector<1x8x128xf32>
    %c0_105 = arith.constant 0 : index
    %c0_106 = arith.constant 0 : index
    %c0_107 = arith.constant 0 : index
    %122 = vector.load %arg13[%c0_105, %c0_106, %c0_107] : memref<1x8x128xf32, #tpu.memory_space<vmem>>, vector<1x8x128xf32>
    tpu.vector_store %arg13[%c0_105, %c0_106, %c0_107], %121 {strides = array<i32>} : memref<1x8x128xf32, #tpu.memory_space<vmem>>, vector<1x8x128xf32>,
    return
  }
  func.func @transform_0(%arg0: i32) -> (i32, i32, i32) {
    %c0_i32 = arith.constant 0 : i32
    %c0_i32_0 = arith.constant 0 : i32
    %c0_i32_1 = arith.constant 0 : i32
    return %arg0, %c0_i32, %c0_i32_0 : i32, i32, i32
  }
  func.func @transform_1(%arg0: i32) -> (i32, i32, i32) {
    %c0_i32 = arith.constant 0 : i32
    %c0_i32_0 = arith.constant 0 : i32
    %c0_i32_1 = arith.constant 0 : i32
    return %arg0, %c0_i32, %c0_i32_0 : i32, i32, i32
  }
  func.func @transform_2(%arg0: i32) -> (i32, i32, i32) {
    %c0_i32 = arith.constant 0 : i32
    %c0_i32_0 = arith.constant 0 : i32
    %c0_i32_1 = arith.constant 0 : i32
    return %arg0, %c0_i32, %c0_i32_0 : i32, i32, i32
  }
  func.func @transform_3(%arg0: i32) -> (i32, i32, i32, i32) {
    %c0_i32 = arith.constant 0 : i32
    %c0_i32_0 = arith.constant 0 : i32
    %c0_i32_1 = arith.constant 0 : i32
    %c0_i32_2 = arith.constant 0 : i32
    return %arg0, %c0_i32, %c0_i32_0, %c0_i32_1 : i32, i32, i32, i32
  }
  func.func @transform_4(%arg0: i32) -> (i32, i32) {
    %c0_i32 = arith.constant 0 : i32
    %c0_i32_0 = arith.constant 0 : i32
    %c0_i32_1 = arith.constant 0 : i32
    return %c0_i32, %c0_i32_0 : i32, i32
  }
  func.func @transform_5(%arg0: i32) -> (i32, i32) {
    %c0_i32 = arith.constant 0 : i32
    %c0_i32_0 = arith.constant 0 : i32
    %c0_i32_1 = arith.constant 0 : i32
    return %c0_i32, %c0_i32_0 : i32, i32
  }
  func.func @transform_6(%arg0: i32) -> (i32, i32) {
    %c0_i32 = arith.constant 0 : i32
    %c0_i32_0 = arith.constant 0 : i32
    %c0_i32_1 = arith.constant 0 : i32
    return %c0_i32, %c0_i32_0 : i32, i32
  }
  func.func @transform_7(%arg0: i32) -> (i32, i32) {
    %c0_i32 = arith.constant 0 : i32
    %c0_i32_0 = arith.constant 0 : i32
    %c0_i32_1 = arith.constant 0 : i32
    return %c0_i32, %c0_i32_0 : i32, i32
  }
  func.func @transform_8(%arg0: i32) -> (i32, i32) {
    %c0_i32 = arith.constant 0 : i32
    %c0_i32_0 = arith.constant 0 : i32
    %c0_i32_1 = arith.constant 0 : i32
    return %c0_i32, %c0_i32_0 : i32, i32
  }
  func.func @transform_9(%arg0: i32) -> (i32, i32) {
    %c0_i32 = arith.constant 0 : i32
    %c0_i32_0 = arith.constant 0 : i32
    %c0_i32_1 = arith.constant 0 : i32
    return %c0_i32, %c0_i32_0 : i32, i32
  }
  func.func @transform_10(%arg0: i32) -> (i32, i32) {
    %c0_i32 = arith.constant 0 : i32
    %c0_i32_0 = arith.constant 0 : i32
    %c0_i32_1 = arith.constant 0 : i32
    return %c0_i32, %c0_i32_0 : i32, i32
  }
  func.func @transform_11(%arg0: i32) -> (i32, i32) {
    %c0_i32 = arith.constant 0 : i32
    %c0_i32_0 = arith.constant 0 : i32
    %c0_i32_1 = arith.constant 0 : i32
    return %c0_i32, %c0_i32_0 : i32, i32
  }
  func.func @transform_12(%arg0: i32) -> (i32, i32, i32) {
    %c0_i32 = arith.constant 0 : i32
    %c0_i32_0 = arith.constant 0 : i32
    %c0_i32_1 = arith.constant 0 : i32
    return %arg0, %c0_i32, %c0_i32_0 : i32, i32, i32
  }
}

</mosaic_0001>

<llo_original>
// kernel: tpu_custom_call.1
$region0: #{tpu_custom_call.1}
  #allocation0 [shape = 'u32[]', space=smem, size = 0x4, offset = 0x4, fixed_abs, tag = 'smem constant byte address 0x4 - core index']
  #allocation1 [shape = 'u32[144,128]{1,0:T(1,128)}', space=vmem, size = 0x12000, scoped, tag = 'internal scratch']
  #allocation2 [shape = 'bf16[1,8,128]{2,1,0:T(8,128)(2,1)}', space=vmem, size = 0x800, scoped, tag = 'scratch operand']
  #allocation3 [shape = 'bf16[1,8,128]{2,1,0:T(8,128)(2,1)}', space=vmem, size = 0x800, scoped, tag = 'scratch operand']
  #allocation4 [shape = 'bf16[1,8,128]{2,1,0:T(8,128)(2,1)}', space=vmem, size = 0x800, scoped, tag = 'scratch operand']
  #allocation5 [shape = 'bf16[1,8,128]{2,1,0:T(8,128)(2,1)}', space=vmem, size = 0x800, scoped, tag = 'scratch operand']
  %s0 = inlined_call_operand.hbm [shape: bf16[2,8,128], index: 0, kind: input, shape index: {}]
  %s1 = inlined_call_operand.hbm [shape: bf16[2,8,128], index: 1, kind: input, shape index: {}]
  %s2 = inlined_call_operand.hbm [shape: bf16[2,8,128], index: 2, kind: input, shape index: {}]
  %s3 = inlined_call_operand.vmem [shape: f32[2,1,1,8], index: 3, kind: input, shape index: {}]
  %s4 = inlined_call_operand.hbm [shape: bf16[128,128], index: 4, kind: input, shape index: {}]
  %s5 = inlined_call_operand.vmem [shape: f32[1,128], index: 5, kind: input, shape index: {}]
  %s6 = inlined_call_operand.hbm [shape: bf16[128,128], index: 6, kind: input, shape index: {}]
  %s7 = inlined_call_operand.vmem [shape: f32[1,128], index: 7, kind: input, shape index: {}]
  %s8 = inlined_call_operand.hbm [shape: bf16[128,128], index: 8, kind: input, shape index: {}]
  %s9 = inlined_call_operand.vmem [shape: f32[1,128], index: 9, kind: input, shape index: {}]
  %s10 = inlined_call_operand.hbm [shape: bf16[128,128], index: 10, kind: input, shape index: {}]
  %s11 = inlined_call_operand.vmem [shape: f32[1,128], index: 11, kind: input, shape index: {}]
  %s12 = inlined_call_operand.hbm [shape: f32[2,8,128], index: 12, kind: output, shape index: {}]
  %s13 = sld [smem:[#allocation0]]
  $region109: #{tpu_custom_call.1} parent=0
    _
  %s15 = ssub.s32 1, %s13
  %s16 = scalar_select 0, %s15, %s13
  $region1: #{tpu_custom_call.1} parent=0
    #allocation6 [shape = 'u8[4096]{0}', space=vmem, size = 0x1000, scoped, tag = 'input window, operand 0']
    #allocation7 [shape = 's32[2]{0}', space=sflag, size = 0x8, scoped, tag = 'scoped memory for tpu_custom_call.1']
    #allocation8 [shape = 's32[2]{0}', space=sflag, size = 0x8, scoped, tag = 'scoped memory for tpu_custom_call.1']
    #allocation9 [shape = 'u8[4096]{0}', space=vmem, size = 0x1000, scoped, tag = 'input window, operand 1']
    #allocation10 [shape = 's32[2]{0}', space=sflag, size = 0x8, scoped, tag = 'scoped memory for tpu_custom_call.1']
    #allocation11 [shape = 'u8[4096]{0}', space=vmem, size = 0x1000, scoped, tag = 'input window, operand 2']
    #allocation12 [shape = 'u8[32768]{0}', space=vmem, size = 0x8000, scoped, tag = 'input window, operand 4, single buffered']
    #allocation13 [shape = 's32[1]{0}', space=sflag, size = 0x4, scoped, tag = 'scoped memory for tpu_custom_call.1']
    #allocation14 [shape = 'u8[32768]{0}', space=vmem, size = 0x8000, scoped, tag = 'input window, operand 6, single buffered']
    #allocation15 [shape = 'u8[32768]{0}', space=vmem, size = 0x8000, scoped, tag = 'input window, operand 8, single buffered']
    #allocation16 [shape = 's32[1]{0}', space=sflag, size = 0x4, scoped, tag = 'scoped memory for tpu_custom_call.1']
    #allocation17 [shape = 'u8[32768]{0}', space=vmem, size = 0x8000, scoped, tag = 'input window, operand 10, single buffered']
    #allocation18 [shape = 'u8[8192]{0}', space=vmem, size = 0x2000, scoped, tag = 'output window, operand 0']
    %17 = vsyncpa [#allocation7], 0
    %s18 = scalar_lea.sflag [#allocation7], 1
    %19 = vsyncpa %s18, 0
    %20 = vsyncpa [#allocation10], 0
    %s21 = scalar_lea.sflag [#allocation10], 1
    %22 = vsyncpa %s21, 0
    %23 = vsyncpa [#allocation13], 0
    %24 = vsyncpa [#allocation16], 0
    %25 = vsyncpa [#allocation8], 0
    %s26 = scalar_lea.sflag [#allocation8], 1
    %27 = vsyncpa %s26, 0
    loop: start=0, step=1, limit=4
    $region2: #{tpu_custom_call.1} parent=1 // loop_pre_header
      _
    $region3: #{tpu_custom_call.1} parent=1 // loop_header
      %s29 = sphi 0, %s33
      %p30 = scmp.ge.s32.totalorder %s29, 4
      %s39 = sphi 0, %s41
      %s42 = sphi 0, %s39
      %s43 = sphi 0, %s42
      %s59 = sphi 0, %s43
      %s65 = sphi 0, %s67
      %s68 = sphi 0, %s65
      %s69 = sphi 0, %s68
      %s85 = sphi 0, %s69
      %s91 = sphi 0, %s93
      %s94 = sphi 0, %s91
      %s95 = sphi 0, %s94
      %s111 = sphi 0, %s95
      %s117 = sphi 0, %s119
      %s120 = sphi 0, %s117
      %s121 = sphi 0, %s120
      %s137 = sphi 0, %s121
      %s141 = sphi 0, %s141
      %s143 = sphi 0, %s141
      %s144 = sphi 0, %s143
      %s158 = sphi 0, %s144
      %s162 = sphi 0, %s162
      %s164 = sphi 0, %s162
      %s165 = sphi 0, %s164
      %s179 = sphi 0, %s165
      %s183 = sphi 0, %s183
      %s185 = sphi 0, %s183
      %s186 = sphi 0, %s185
      %s200 = sphi 0, %s186
      %s204 = sphi 0, %s204
      %s206 = sphi 0, %s204
      %s207 = sphi 0, %s206
      %s221 = sphi 0, %s207
      %s225 = sphi 0, %s225
      %s227 = sphi 0, %s225
      %s228 = sphi 0, %s227
      %s242 = sphi 0, %s228
      %s246 = sphi 0, %s246
      %s248 = sphi 0, %s246
      %s249 = sphi 0, %s248
      %s263 = sphi 0, %s249
      %s267 = sphi 0, %s267
      %s269 = sphi 0, %s267
      %s270 = sphi 0, %s269
      %s284 = sphi 0, %s270
      %s288 = sphi 0, %s288
      %s290 = sphi 0, %s288
      %s291 = sphi 0, %s290
      %s305 = sphi 0, %s291
      %s311 = sphi 0, %s313
      %s314 = sphi 0, %s311
      %s315 = sphi 0, %s314
      %s331 = sphi 0, %s315
    $region4: #{tpu_custom_call.1} parent=1 // loop_header_branch
      %32 = sbr.rel (%p30) target = $region8
    $region5: #{tpu_custom_call.1} parent=1 // loop_body
      %s34 = ssub.s32 %s29, 1
      %s35 = ssub.s32 %s29, 2
      %s36 = sadd.s32 %s29, 1
      %s37 = ssub.s32 %s29, %s36
      %p38 = scmp.eq.s32.totalorder %s37, 0
      %s40 = sadd.s32 %s39, 1
      %s41 = scalar_select %p38, %s39, %s40
      %p44 = pneg %p38
      %p45 = scmp.eq.s32.totalorder %s29, 1
      %p46 = por %p44, %p45
      %p47 = scmp.ne.s32.totalorder %s39, %s42
      %p48 = scmp.eq.s32.totalorder %s29, 0
      %p49 = por %p47, %p48
      %p50 = scmp.ne.s32.totalorder %s39, %s42
      %p51 = scmp.eq.s32.totalorder %s34, 1
      %p52 = por %p50, %p51
      %p53 = scmp.ne.s32.totalorder %s42, %s43
      %p54 = scmp.eq.s32.totalorder %s34, 0
      %p55 = por %p53, %p54
      %p56 = scmp.ne.s32.totalorder %s42, %s43
      %p57 = scmp.eq.s32.totalorder %s35, 1
      %p58 = por %p56, %p57
      %p60 = scmp.ne.s32.totalorder %s43, %s59
      %p61 = scmp.eq.s32.totalorder %s35, 0
      %p62 = por %p60, %p61
      %s63 = ssub.s32 %s29, %s36
      %p64 = scmp.eq.s32.totalorder %s63, 0
      %s66 = sadd.s32 %s65, 1
      %s67 = scalar_select %p64, %s65, %s66
      %p70 = pneg %p64
      %p71 = scmp.eq.s32.totalorder %s29, 1
      %p72 = por %p70, %p71
      %p73 = scmp.ne.s32.totalorder %s65, %s68
      %p74 = scmp.eq.s32.totalorder %s29, 0
      %p75 = por %p73, %p74
      %p76 = scmp.ne.s32.totalorder %s65, %s68
      %p77 = scmp.eq.s32.totalorder %s34, 1
      %p78 = por %p76, %p77
      %p79 = scmp.ne.s32.totalorder %s68, %s69
      %p80 = scmp.eq.s32.totalorder %s34, 0
      %p81 = por %p79, %p80
      %p82 = scmp.ne.s32.totalorder %s68, %s69
      %p83 = scmp.eq.s32.totalorder %s35, 1
      %p84 = por %p82, %p83
      %p86 = scmp.ne.s32.totalorder %s69, %s85
      %p87 = scmp.eq.s32.totalorder %s35, 0
      %p88 = por %p86, %p87
      %s89 = ssub.s32 %s29, %s36
      %p90 = scmp.eq.s32.totalorder %s89, 0
      %s92 = sadd.s32 %s91, 1
      %s93 = scalar_select %p90, %s91, %s92
      %p96 = pneg %p90
      %p97 = scmp.eq.s32.totalorder %s29, 1
      %p98 = por %p96, %p97
      %p99 = scmp.ne.s32.totalorder %s91, %s94
      %p100 = scmp.eq.s32.totalorder %s29, 0
      %p101 = por %p99, %p100
      %p102 = scmp.ne.s32.totalorder %s91, %s94
      %p103 = scmp.eq.s32.totalorder %s34, 1
      %p104 = por %p102, %p103
      %p105 = scmp.ne.s32.totalorder %s94, %s95
      %p106 = scmp.eq.s32.totalorder %s34, 0
      %p107 = por %p105, %p106
      %p108 = scmp.ne.s32.totalorder %s94, %s95
      %p109 = scmp.eq.s32.totalorder %s35, 1
      %p110 = por %p108, %p109
      %p112 = scmp.ne.s32.totalorder %s95, %s111
      %p113 = scmp.eq.s32.totalorder %s35, 0
      %p114 = por %p112, %p113
      %s115 = ssub.s32 %s29, %s36
      %p116 = scmp.eq.s32.totalorder %s115, 0
      %s118 = sadd.s32 %s117, 1
      %s119 = scalar_select %p116, %s117, %s118
      %p122 = pneg %p116
      %p123 = scmp.eq.s32.totalorder %s29, 1
      %p124 = por %p122, %p123
      %p125 = scmp.ne.s32.totalorder %s117, %s120
      %p126 = scmp.eq.s32.totalorder %s29, 0
      %p127 = por %p125, %p126
      %p128 = scmp.ne.s32.totalorder %s117, %s120
      %p129 = scmp.eq.s32.totalorder %s34, 1
      %p130 = por %p128, %p129
      %p131 = scmp.ne.s32.totalorder %s120, %s121
      %p132 = scmp.eq.s32.totalorder %s34, 0
      %p133 = por %p131, %p132
      %p134 = scmp.ne.s32.totalorder %s120, %s121
      %p135 = scmp.eq.s32.totalorder %s35, 1
      %p136 = por %p134, %p135
      %p138 = scmp.ne.s32.totalorder %s121, %s137
      %p139 = scmp.eq.s32.totalorder %s35, 0
      %p140 = por %p138, %p139
      %s142 = sadd.s32 %s141, 1
      %p145 = scmp.eq.s32.totalorder %s29, 1
      %p146 = scmp.ne.s32.totalorder %s141, %s143
      %p147 = scmp.eq.s32.totalorder %s29, 0
      %p148 = por %p146, %p147
      %p149 = scmp.ne.s32.totalorder %s141, %s143
      %p150 = scmp.eq.s32.totalorder %s34, 1
      %p151 = por %p149, %p150
      %p152 = scmp.ne.s32.totalorder %s143, %s144
      %p153 = scmp.eq.s32.totalorder %s34, 0
      %p154 = por %p152, %p153
      %p155 = scmp.ne.s32.totalorder %s143, %s144
      %p156 = scmp.eq.s32.totalorder %s35, 1
      %p157 = por %p155, %p156
      %p159 = scmp.ne.s32.totalorder %s144, %s158
      %p160 = scmp.eq.s32.totalorder %s35, 0
      %p161 = por %p159, %p160
      %s163 = sadd.s32 %s162, 1
      %p166 = scmp.eq.s32.totalorder %s29, 1
      %p167 = scmp.ne.s32.totalorder %s162, %s164
      %p168 = scmp.eq.s32.totalorder %s29, 0
      %p169 = por %p167, %p168
      %p170 = scmp.ne.s32.totalorder %s162, %s164
      %p171 = scmp.eq.s32.totalorder %s34, 1
      %p172 = por %p170, %p171
      %p173 = scmp.ne.s32.totalorder %s164, %s165
      %p174 = scmp.eq.s32.totalorder %s34, 0
      %p175 = por %p173, %p174
      %p176 = scmp.ne.s32.totalorder %s164, %s165
      %p177 = scmp.eq.s32.totalorder %s35, 1
      %p178 = por %p176, %p177
      %p180 = scmp.ne.s32.totalorder %s165, %s179
      %p181 = scmp.eq.s32.totalorder %s35, 0
      %p182 = por %p180, %p181
      %s184 = sadd.s32 %s183, 1
      %p187 = scmp.eq.s32.totalorder %s29, 1
      %p188 = scmp.ne.s32.totalorder %s183, %s185
      %p189 = scmp.eq.s32.totalorder %s29, 0
      %p190 = por %p188, %p189
      %p191 = scmp.ne.s32.totalorder %s183, %s185
      %p192 = scmp.eq.s32.totalorder %s34, 1
      %p193 = por %p191, %p192
      %p194 = scmp.ne.s32.totalorder %s185, %s186
      %p195 = scmp.eq.s32.totalorder %s34, 0
      %p196 = por %p194, %p195
      %p197 = scmp.ne.s32.totalorder %s185, %s186
      %p198 = scmp.eq.s32.totalorder %s35, 1
      %p199 = por %p197, %p198
      %p201 = scmp.ne.s32.totalorder %s186, %s200
      %p202 = scmp.eq.s32.totalorder %s35, 0
      %p203 = por %p201, %p202
      %s205 = sadd.s32 %s204, 1
      %p208 = scmp.eq.s32.totalorder %s29, 1
      %p209 = scmp.ne.s32.totalorder %s204, %s206
      %p210 = scmp.eq.s32.totalorder %s29, 0
      %p211 = por %p209, %p210
      %p212 = scmp.ne.s32.totalorder %s204, %s206
      %p213 = scmp.eq.s32.totalorder %s34, 1
      %p214 = por %p212, %p213
      %p215 = scmp.ne.s32.totalorder %s206, %s207
      %p216 = scmp.eq.s32.totalorder %s34, 0
      %p217 = por %p215, %p216
      %p218 = scmp.ne.s32.totalorder %s206, %s207
      %p219 = scmp.eq.s32.totalorder %s35, 1
      %p220 = por %p218, %p219
      %p222 = scmp.ne.s32.totalorder %s207, %s221
      %p223 = scmp.eq.s32.totalorder %s35, 0
      %p224 = por %p222, %p223
      %s226 = sadd.s32 %s225, 1
      %p229 = scmp.eq.s32.totalorder %s29, 1
      %p230 = scmp.ne.s32.totalorder %s225, %s227
      %p231 = scmp.eq.s32.totalorder %s29, 0
      %p232 = por %p230, %p231
      %p233 = scmp.ne.s32.totalorder %s225, %s227
      %p234 = scmp.eq.s32.totalorder %s34, 1
      %p235 = por %p233, %p234
      %p236 = scmp.ne.s32.totalorder %s227, %s228
      %p237 = scmp.eq.s32.totalorder %s34, 0
      %p238 = por %p236, %p237
      %p239 = scmp.ne.s32.totalorder %s227, %s228
      %p240 = scmp.eq.s32.totalorder %s35, 1
      %p241 = por %p239, %p240
      %p243 = scmp.ne.s32.totalorder %s228, %s242
      %p244 = scmp.eq.s32.totalorder %s35, 0
      %p245 = por %p243, %p244
      %s247 = sadd.s32 %s246, 1
      %p250 = scmp.eq.s32.totalorder %s29, 1
      %p251 = scmp.ne.s32.totalorder %s246, %s248
      %p252 = scmp.eq.s32.totalorder %s29, 0
      %p253 = por %p251, %p252
      %p254 = scmp.ne.s32.totalorder %s246, %s248
      %p255 = scmp.eq.s32.totalorder %s34, 1
      %p256 = por %p254, %p255
      %p257 = scmp.ne.s32.totalorder %s248, %s249
      %p258 = scmp.eq.s32.totalorder %s34, 0
      %p259 = por %p257, %p258
      %p260 = scmp.ne.s32.totalorder %s248, %s249
      %p261 = scmp.eq.s32.totalorder %s35, 1
      %p262 = por %p260, %p261
      %p264 = scmp.ne.s32.totalorder %s249, %s263
      %p265 = scmp.eq.s32.totalorder %s35, 0
      %p266 = por %p264, %p265
      %s268 = sadd.s32 %s267, 1
      %p271 = scmp.eq.s32.totalorder %s29, 1
      %p272 = scmp.ne.s32.totalorder %s267, %s269
      %p273 = scmp.eq.s32.totalorder %s29, 0
      %p274 = por %p272, %p273
      %p275 = scmp.ne.s32.totalorder %s267, %s269
      %p276 = scmp.eq.s32.totalorder %s34, 1
      %p277 = por %p275, %p276
      %p278 = scmp.ne.s32.totalorder %s269, %s270
      %p279 = scmp.eq.s32.totalorder %s34, 0
      %p280 = por %p278, %p279
      %p281 = scmp.ne.s32.totalorder %s269, %s270
      %p282 = scmp.eq.s32.totalorder %s35, 1
      %p283 = por %p281, %p282
      %p285 = scmp.ne.s32.totalorder %s270, %s284
      %p286 = scmp.eq.s32.totalorder %s35, 0
      %p287 = por %p285, %p286
      %s289 = sadd.s32 %s288, 1
      %p292 = scmp.eq.s32.totalorder %s29, 1
      %p293 = scmp.ne.s32.totalorder %s288, %s290
      %p294 = scmp.eq.s32.totalorder %s29, 0
      %p295 = por %p293, %p294
      %p296 = scmp.ne.s32.totalorder %s288, %s290
      %p297 = scmp.eq.s32.totalorder %s34, 1
      %p298 = por %p296, %p297
      %p299 = scmp.ne.s32.totalorder %s290, %s291
      %p300 = scmp.eq.s32.totalorder %s34, 0
      %p301 = por %p299, %p300
      %p302 = scmp.ne.s32.totalorder %s290, %s291
      %p303 = scmp.eq.s32.totalorder %s35, 1
      %p304 = por %p302, %p303
      %p306 = scmp.ne.s32.totalorder %s291, %s305
      %p307 = scmp.eq.s32.totalorder %s35, 0
      %p308 = por %p306, %p307
      %s309 = ssub.s32 %s29, %s36
      %p310 = scmp.eq.s32.totalorder %s309, 0
      %s312 = sadd.s32 %s311, 1
      %s313 = scalar_select %p310, %s311, %s312
      %p316 = pneg %p310
      %p317 = scmp.eq.s32.totalorder %s29, 1
      %p318 = por %p316, %p317
      %p319 = scmp.ne.s32.totalorder %s311, %s314
      %p320 = scmp.eq.s32.totalorder %s29, 0
      %p321 = por %p319, %p320
      %p322 = scmp.ne.s32.totalorder %s311, %s314
      %p323 = scmp.eq.s32.totalorder %s34, 1
      %p324 = por %p322, %p323
      %p325 = scmp.ne.s32.totalorder %s314, %s315
      %p326 = scmp.eq.s32.totalorder %s34, 0
      %p327 = por %p325, %p326
      %p328 = scmp.ne.s32.totalorder %s314, %s315
      %p329 = scmp.eq.s32.totalorder %s35, 1
      %p330 = por %p328, %p329
      %p332 = scmp.ne.s32.totalorder %s315, %s331
      %p333 = scmp.eq.s32.totalorder %s35, 0
      %p334 = por %p332, %p333
      %p335 = scmp.le.s32.totalorder 1, %s29
      %p336 = scmp.lt.s32.totalorder %s29, 3
      %p337 = pnand %p335, %p336
      %p338 = pneg %p337
      // Predicated region
      $region9: #{tpu_custom_call.1} parent=5 // pred_check
        _
      $region10: #{tpu_custom_call.1} parent=5 // pred_check_branch
        %340 = sbr.rel (%p337) target = $region12
      $region11: #{tpu_custom_call.1} parent=5 // pred_region
        %s341 = ssub.s32 %s29, 1
        // Predicated region
        $region13: #{tpu_custom_call.1} parent=11 // pred_check
          %p342 = pneg %p154
        $region14: #{tpu_custom_call.1} parent=11 // pred_check_branch
          %344 = sbr.rel (%p342) target = $region16
        $region15: #{tpu_custom_call.1} parent=11 // pred_region
          %s346 = ssub.s32 1024, 1024
          %347 = vsyncadd [#allocation13], %s346
          %s348 = sshll.u32 [#allocation12], 4
          %s349 = int_to_ptr.vmem [resolvable:$true] %s348
          %354 = dma.hbm_to_vmem [thread:$0]  %s4, 1024, %s349, [#allocation13], 64, 64, 4
        $region16: #{tpu_custom_call.1} parent=11 // pred_fallthru
          _
        // Predicated region
        $region17: #{tpu_custom_call.1} parent=11 // pred_check
          %p355 = pneg %p175
        $region18: #{tpu_custom_call.1} parent=11 // pred_check_branch
          %357 = sbr.rel (%p355) target = $region20
        $region19: #{tpu_custom_call.1} parent=11 // pred_region
          _
        $region20: #{tpu_custom_call.1} parent=11 // pred_fallthru
          _
        // Predicated region
        $region21: #{tpu_custom_call.1} parent=11 // pred_check
          %p358 = pneg %p196
        $region22: #{tpu_custom_call.1} parent=11 // pred_check_branch
          %360 = sbr.rel (%p358) target = $region24
        $region23: #{tpu_custom_call.1} parent=11 // pred_region
          %s362 = ssub.s32 1024, 1024
          %363 = vsyncadd [#allocation13], %s362
          %s364 = sshll.u32 [#allocation14], 4
          %s365 = int_to_ptr.vmem [resolvable:$true] %s364
          %370 = dma.hbm_to_vmem [thread:$0]  %s6, 1024, %s365, [#allocation13], 64, 64, 4
        $region24: #{tpu_custom_call.1} parent=11 // pred_fallthru
          _
        // Predicated region
        $region25: #{tpu_custom_call.1} parent=11 // pred_check
          %p371 = pneg %p217
        $region26: #{tpu_custom_call.1} parent=11 // pred_check_branch
          %373 = sbr.rel (%p371) target = $region28
        $region27: #{tpu_custom_call.1} parent=11 // pred_region
          _
        $region28: #{tpu_custom_call.1} parent=11 // pred_fallthru
          _
        // Predicated region
        $region29: #{tpu_custom_call.1} parent=11 // pred_check
          %p374 = pneg %p238
        $region30: #{tpu_custom_call.1} parent=11 // pred_check_branch
          %376 = sbr.rel (%p374) target = $region32
        $region31: #{tpu_custom_call.1} parent=11 // pred_region
          %s378 = ssub.s32 1024, 1024
          %379 = vsyncadd [#allocation16], %s378
          %s380 = sshll.u32 [#allocation15], 4
          %s381 = int_to_ptr.vmem [resolvable:$true] %s380
          %386 = dma.hbm_to_vmem [thread:$0]  %s8, 1024, %s381, [#allocation16], 64, 64, 4
        $region32: #{tpu_custom_call.1} parent=11 // pred_fallthru
          _
        // Predicated region
        $region33: #{tpu_custom_call.1} parent=11 // pred_check
          %p387 = pneg %p259
        $region34: #{tpu_custom_call.1} parent=11 // pred_check_branch
          %389 = sbr.rel (%p387) target = $region36
        $region35: #{tpu_custom_call.1} parent=11 // pred_region
          _
        $region36: #{tpu_custom_call.1} parent=11 // pred_fallthru
          _
        // Predicated region
        $region37: #{tpu_custom_call.1} parent=11 // pred_check
          %p390 = pneg %p280
        $region38: #{tpu_custom_call.1} parent=11 // pred_check_branch
          %392 = sbr.rel (%p390) target = $region40
        $region39: #{tpu_custom_call.1} parent=11 // pred_region
          %s394 = ssub.s32 1024, 1024
          %395 = vsyncadd [#allocation16], %s394
          %s396 = sshll.u32 [#allocation17], 4
          %s397 = int_to_ptr.vmem [resolvable:$true] %s396
          %402 = dma.hbm_to_vmem [thread:$0]  %s10, 1024, %s397, [#allocation16], 64, 64, 4
        $region40: #{tpu_custom_call.1} parent=11 // pred_fallthru
          _
        // Predicated region
        $region41: #{tpu_custom_call.1} parent=11 // pred_check
          %p403 = pneg %p301
        $region42: #{tpu_custom_call.1} parent=11 // pred_check_branch
          %405 = sbr.rel (%p403) target = $region44
        $region43: #{tpu_custom_call.1} parent=11 // pred_region
          _
        $region44: #{tpu_custom_call.1} parent=11 // pred_fallthru
          _
      $region12: #{tpu_custom_call.1} parent=5 // pred_fallthru
        _
      %p406 = scmp.lt.s32.totalorder %s29, 2
      // Predicated region
      $region45: #{tpu_custom_call.1} parent=5 // pred_check
        %p407 = pneg %p406
      $region46: #{tpu_custom_call.1} parent=5 // pred_check_branch
        %409 = sbr.rel (%p407) target = $region48
      $region47: #{tpu_custom_call.1} parent=5 // pred_region
        // Predicated region
        $region49: #{tpu_custom_call.1} parent=47 // pred_check
          %p410 = pneg %p49
        $region50: #{tpu_custom_call.1} parent=47 // pred_check_branch
          %412 = sbr.rel (%p410) target = $region52
        $region51: #{tpu_custom_call.1} parent=47 // pred_region
          %s413 = sand.u32 %s39, 1
          %s414 = scalar_lea.sflag [#allocation7], %s413
          %s415 = sand.u32 %s39, 1
          %s416 = smul.addr %s415, 4
          %s417 = scalar_lea.vmem [#allocation6], %s416
          %s419 = ssub.s32 64, 64
          %420 = vsyncadd %s414, %s419
          %s421 = smul.addr %s29, 64
          %s422 = scalar_lea.hbm %s0, %s421
          %s424 = sshll.u32 %s417, 4
          %s425 = int_to_ptr.vmem [resolvable:$true] %s424
          %427 = dma.hbm_to_vmem [thread:$0]  %s422, 64, %s425, %s414
        $region52: #{tpu_custom_call.1} parent=47 // pred_fallthru
          _
        // Predicated region
        $region53: #{tpu_custom_call.1} parent=47 // pred_check
          %p428 = pneg %p75
        $region54: #{tpu_custom_call.1} parent=47 // pred_check_branch
          %430 = sbr.rel (%p428) target = $region56
        $region55: #{tpu_custom_call.1} parent=47 // pred_region
          %s431 = sand.u32 %s29, 1
          %s432 = scalar_lea.sflag [#allocation10], %s431
          %s433 = sand.u32 %s65, 1
          %s434 = smul.addr %s433, 4
          %s435 = scalar_lea.vmem [#allocation9], %s434
          %s437 = ssub.s32 64, 64
          %438 = vsyncadd %s432, %s437
          %s439 = smul.addr %s29, 64
          %s440 = scalar_lea.hbm %s1, %s439
          %s442 = sshll.u32 %s435, 4
          %s443 = int_to_ptr.vmem [resolvable:$true] %s442
          %445 = dma.hbm_to_vmem [thread:$0]  %s440, 64, %s443, %s432
        $region56: #{tpu_custom_call.1} parent=47 // pred_fallthru
          _
        // Predicated region
        $region57: #{tpu_custom_call.1} parent=47 // pred_check
          %p446 = pneg %p101
        $region58: #{tpu_custom_call.1} parent=47 // pred_check_branch
          %448 = sbr.rel (%p446) target = $region60
        $region59: #{tpu_custom_call.1} parent=47 // pred_region
          %s449 = sand.u32 %s29, 1
          %s450 = scalar_lea.sflag [#allocation10], %s449
          %s451 = sand.u32 %s91, 1
          %s452 = smul.addr %s451, 4
          %s453 = scalar_lea.vmem [#allocation11], %s452
          %s455 = ssub.s32 64, 64
          %456 = vsyncadd %s450, %s455
          %s457 = smul.addr %s29, 64
          %s458 = scalar_lea.hbm %s2, %s457
          %s460 = sshll.u32 %s453, 4
          %s461 = int_to_ptr.vmem [resolvable:$true] %s460
          %463 = dma.hbm_to_vmem [thread:$0]  %s458, 64, %s461, %s450
        $region60: #{tpu_custom_call.1} parent=47 // pred_fallthru
          _
        // Predicated region
        $region61: #{tpu_custom_call.1} parent=47 // pred_check
          %p464 = pneg %p127
        $region62: #{tpu_custom_call.1} parent=47 // pred_check_branch
          %466 = sbr.rel (%p464) target = $region64
        $region63: #{tpu_custom_call.1} parent=47 // pred_region
          %p467 = scmp.lt.s32.totalorder %s29, 1
          %s468 = scalar_select %p467, %s29, 1
          %s469 = scalar_lea.vmem %s3, %s468
        $region64: #{tpu_custom_call.1} parent=47 // pred_fallthru
          _
      $region48: #{tpu_custom_call.1} parent=5 // pred_fallthru
        _
      %p470 = scmp.le.s32.totalorder 1, %s29
      %p471 = scmp.lt.s32.totalorder %s29, 3
      %p472 = pnand %p470, %p471
      %p473 = pneg %p472
      // Predicated region
      $region65: #{tpu_custom_call.1} parent=5 // pred_check
        _
      $region66: #{tpu_custom_call.1} parent=5 // pred_check_branch
        %475 = sbr.rel (%p472) target = $region68
      $region67: #{tpu_custom_call.1} parent=5 // pred_region
        %s476 = ssub.s32 %s29, 1
        %s477 = sand.u32 %s42, 1
        %s478 = scalar_lea.sflag [#allocation7], %s477
        %s479 = sand.u32 %s42, 1
        %s480 = smul.addr %s479, 4
        %s481 = scalar_lea.vmem [#allocation6], %s480
        // Predicated region
        $region69: #{tpu_custom_call.1} parent=67 // pred_check
          %p482 = pneg %p55
        $region70: #{tpu_custom_call.1} parent=67 // pred_check_branch
          %484 = sbr.rel (%p482) target = $region72
        $region71: #{tpu_custom_call.1} parent=67 // pred_region
          %485 = dma.done %s478, 64
        $region72: #{tpu_custom_call.1} parent=67 // pred_fallthru
          _
        %s486 = sand.u32 %s34, 1
        %s487 = scalar_lea.sflag [#allocation10], %s486
        %s488 = sand.u32 %s68, 1
        %s489 = smul.addr %s488, 4
        %s490 = scalar_lea.vmem [#allocation9], %s489
        // Predicated region
        $region73: #{tpu_custom_call.1} parent=67 // pred_check
          %p491 = pneg %p81
        $region74: #{tpu_custom_call.1} parent=67 // pred_check_branch
          %493 = sbr.rel (%p491) target = $region76
        $region75: #{tpu_custom_call.1} parent=67 // pred_region
          %494 = dma.done %s487, 64
        $region76: #{tpu_custom_call.1} parent=67 // pred_fallthru
          _
        %s495 = sand.u32 %s34, 1
        %s496 = scalar_lea.sflag [#allocation10], %s495
        %s497 = sand.u32 %s94, 1
        %s498 = smul.addr %s497, 4
        %s499 = scalar_lea.vmem [#allocation11], %s498
        // Predicated region
        $region77: #{tpu_custom_call.1} parent=67 // pred_check
          %p500 = pneg %p107
        $region78: #{tpu_custom_call.1} parent=67 // pred_check_branch
          %502 = sbr.rel (%p500) target = $region80
        $region79: #{tpu_custom_call.1} parent=67 // pred_region
          %503 = dma.done %s496, 64
        $region80: #{tpu_custom_call.1} parent=67 // pred_fallthru
          _
        // Predicated region
        $region81: #{tpu_custom_call.1} parent=67 // pred_check
          %p504 = pneg %p154
        $region82: #{tpu_custom_call.1} parent=67 // pred_check_branch
          %506 = sbr.rel (%p504) target = $region84
        $region83: #{tpu_custom_call.1} parent=67 // pred_region
          %507 = dma.done [#allocation13], 1024
        $region84: #{tpu_custom_call.1} parent=67 // pred_fallthru
          _
        // Predicated region
        $region85: #{tpu_custom_call.1} parent=67 // pred_check
          %p508 = pneg %p196
        $region86: #{tpu_custom_call.1} parent=67 // pred_check_branch
          %510 = sbr.rel (%p508) target = $region88
        $region87: #{tpu_custom_call.1} parent=67 // pred_region
          %511 = dma.done [#allocation13], 1024
        $region88: #{tpu_custom_call.1} parent=67 // pred_fallthru
          _
        // Predicated region
        $region89: #{tpu_custom_call.1} parent=67 // pred_check
          %p512 = pneg %p238
        $region90: #{tpu_custom_call.1} parent=67 // pred_check_branch
          %514 = sbr.rel (%p512) target = $region92
        $region91: #{tpu_custom_call.1} parent=67 // pred_region
          %515 = dma.done [#allocation16], 1024
        $region92: #{tpu_custom_call.1} parent=67 // pred_fallthru
          _
        // Predicated region
        $region93: #{tpu_custom_call.1} parent=67 // pred_check
          %p516 = pneg %p280
        $region94: #{tpu_custom_call.1} parent=67 // pred_check_branch
          %518 = sbr.rel (%p516) target = $region96
        $region95: #{tpu_custom_call.1} parent=67 // pred_region
          %519 = dma.done [#allocation16], 1024
        $region96: #{tpu_custom_call.1} parent=67 // pred_fallthru
          _
        %s520 = sand.u32 %s42, 1
        %s521 = scalar_lea.sflag [#allocation7], %s520
        %s522 = sand.u32 %s42, 1
        %s523 = smul.addr %s522, 4
        %s524 = scalar_lea.vmem [#allocation6], %s523
        %p525 = pneg %p55
        %p526 = pneg %p52
        %s527 = sand.u32 %s34, 1
        %s528 = scalar_lea.sflag [#allocation10], %s527
        %s529 = sand.u32 %s68, 1
        %s530 = smul.addr %s529, 4
        %s531 = scalar_lea.vmem [#allocation9], %s530
        %p532 = pneg %p81
        %p533 = pneg %p78
        %s534 = sand.u32 %s34, 1
        %s535 = scalar_lea.sflag [#allocation10], %s534
        %s536 = sand.u32 %s94, 1
        %s537 = smul.addr %s536, 4
        %s538 = scalar_lea.vmem [#allocation11], %s537
        %p539 = pneg %p107
        %p540 = pneg %p104
        %p541 = scmp.lt.s32.totalorder %s34, 1
        %s542 = scalar_select %p541, %s34, 1
        %s543 = scalar_lea.vmem %s3, %s542
        %p544 = pneg %p133
        %p545 = pneg %p130
        %p546 = pneg %p154
        %p547 = pneg %p151
        %p548 = pneg %p175
        %p549 = pneg %p172
        %p550 = pneg %p196
        %p551 = pneg %p193
        %p552 = pneg %p217
        %p553 = pneg %p214
        %p554 = pneg %p238
        %p555 = pneg %p235
        %p556 = pneg %p259
        %p557 = pneg %p256
        %p558 = pneg %p280
        %p559 = pneg %p277
        %p560 = pneg %p301
        %p561 = pneg %p298
        %p562 = pneg %p327
        %p563 = pneg %p324
        %s564 = sand.u32 %s314, 1
        %s565 = scalar_lea.sflag [#allocation8], %s564
        %s566 = sand.u32 %s314, 1
        %s567 = smul.addr %s566, 8
        %s568 = scalar_lea.vmem [#allocation18], %s567
        %p569 = scmp.lt.s32.totalorder %s34, 1
        %s570 = scalar_select %p569, %s34, 1
        %s571 = scalar_lea.vmem %s3, %s570
        %v573 = vld [vmem:[%s481] sm:$0xf]
        %v574 = vld [vmem:[%s490] sm:$0xf]
        %v575 = vld [vmem:[%s499] sm:$0xf]
        %v576 = vld [vmem:[#allocation12] sm:$0xf]
        %v577 = vld [vmem:[#allocation12 + $0x4] sm:$0xf]
        %v578 = vld [vmem:[#allocation12 + $0x8] sm:$0xf]
        %v579 = vld [vmem:[#allocation12 + $0xc] sm:$0xf]
        %v580 = vld [vmem:[#allocation12 + $0x10] sm:$0xf]
        %v581 = vld [vmem:[#allocation12 + $0x14] sm:$0xf]
        %v582 = vld [vmem:[#allocation12 + $0x18] sm:$0xf]
        %v583 = vld [vmem:[#allocation12 + $0x1c] sm:$0xf]
        %v584 = vld [vmem:[#allocation12 + $0x20] sm:$0xf]
        %v585 = vld [vmem:[#allocation12 + $0x24] sm:$0xf]
        %v586 = vld [vmem:[#allocation12 + $0x28] sm:$0xf]
        %v587 = vld [vmem:[#allocation12 + $0x2c] sm:$0xf]
        %v588 = vld [vmem:[#allocation12 + $0x30] sm:$0xf]
        %v589 = vld [vmem:[#allocation12 + $0x34] sm:$0xf]
        %v590 = vld [vmem:[#allocation12 + $0x38] sm:$0xf]
        %v591 = vld [vmem:[#allocation12 + $0x3c] sm:$0xf]
        %v592 = vld [vmem:[%s5] sm:$0x1]
        %v594 = vlaneseq
        %v595 = vshrl.u32 %v594, 7
        %v596 = vsub.s32 0, %v595
        %v597 = vrot.slane %v592, %v596
        %v615 = vunpack.c.l.b16 %v576
        %v616 = vunpack.c.l.b16 %v577
        %v617 = vunpack.c.l.b16 %v578
        %v618 = vunpack.c.l.b16 %v579
        %v619 = vunpack.c.l.b16 %v580
        %v620 = vunpack.c.l.b16 %v581
        %v621 = vunpack.c.l.b16 %v582
        %v622 = vunpack.c.l.b16 %v583
        %v623 = vunpack.c.l.b16 %v584
        %v624 = vunpack.c.l.b16 %v585
        %v625 = vunpack.c.l.b16 %v586
        %v626 = vunpack.c.l.b16 %v587
        %v627 = vunpack.c.l.b16 %v588
        %v628 = vunpack.c.l.b16 %v589
        %v629 = vunpack.c.l.b16 %v590
        %v630 = vunpack.c.l.b16 %v591
        %v631 = vpack.c.b16 %v616, %v615
        %v632 = vpack.c.b16 %v618, %v617
        %v633 = vpack.c.b16 %v620, %v619
        %v634 = vpack.c.b16 %v622, %v621
        %v635 = vpack.c.b16 %v624, %v623
        %v636 = vpack.c.b16 %v626, %v625
        %v637 = vpack.c.b16 %v628, %v627
        %v638 = vpack.c.b16 %v630, %v629
        %647 = vmatprep.subr.bf16.mxu0 0
        %648 = vmatpush1.bf16.msra.mxu0 %v631
        %649 = vmatprep.subr.bf16.mxu0 0
        %650 = vmatpush1.bf16.msra.mxu0 %v632
        %651 = vmatprep.subr.bf16.mxu0 0
        %652 = vmatpush1.bf16.msra.mxu0 %v633
        %653 = vmatprep.subr.bf16.mxu0 0
        %654 = vmatpush1.bf16.msra.mxu0 %v634
        %655 = vmatprep.subr.bf16.mxu0 0
        %656 = vmatpush1.bf16.msra.mxu0 %v635
        %657 = vmatprep.subr.bf16.mxu0 0
        %658 = vmatpush1.bf16.msra.mxu0 %v636
        %659 = vmatprep.subr.bf16.mxu0 0
        %660 = vmatpush1.bf16.msra.mxu0 %v637
        %661 = vmatprep.subr.bf16.mxu0 0
        %662 = vmatpush1.bf16.msra.mxu0 %v638
        %663 = vmatprep.subr.bf16.mxu0 0
        %664 = vmatpush1.bf16.msra.mxu0 0
        %665 = vmatprep.subr.bf16.mxu0 0
        %666 = vmatpush1.bf16.msra.mxu0 0
        %667 = vmatprep.subr.bf16.mxu0 0
        %668 = vmatpush1.bf16.msra.mxu0 0
        %669 = vmatprep.subr.bf16.mxu0 0
        %670 = vmatpush1.bf16.msra.mxu0 0
        %671 = vmatprep.subr.bf16.mxu0 0
        %672 = vmatpush1.bf16.msra.mxu0 0
        %673 = vmatprep.subr.bf16.mxu0 0
        %674 = vmatpush1.bf16.msra.mxu0 0
        %675 = vmatprep.subr.bf16.mxu0 0
        %676 = vmatpush1.bf16.msra.mxu0 0
        %677 = vmatprep.subr.bf16.mxu0 0
        %678 = vmatpush1.bf16.msra.mxu0 0
        %679 = vmatprep.mubr.bf16.mxu0 0
        %680 = vmatmul.mubr.bf16.gmra.mrb[0].mxu0 %v573
        %v681 = vpop.f32.mrb[0].mxu0
        %v682 = vadd.f32 %v597, %v681
        %v683 = vpop.f32.mrb[0].mxu0
        %v684 = vpop.f32.mrb[0].mxu0
        %v685 = vpop.f32.mrb[0].mxu0
        %686 = vdwg.mxu0
        %v687 = vmul.f32 %v682, 0.17677669
        %v688 = vld [vmem:[#allocation14] sm:$0xf]
        %v689 = vld [vmem:[#allocation14 + $0x4] sm:$0xf]
        %v690 = vld [vmem:[#allocation14 + $0x8] sm:$0xf]
        %v691 = vld [vmem:[#allocation14 + $0xc] sm:$0xf]
        %v692 = vld [vmem:[#allocation14 + $0x10] sm:$0xf]
        %v693 = vld [vmem:[#allocation14 + $0x14] sm:$0xf]
        %v694 = vld [vmem:[#allocation14 + $0x18] sm:$0xf]
        %v695 = vld [vmem:[#allocation14 + $0x1c] sm:$0xf]
        %v696 = vld [vmem:[#allocation14 + $0x20] sm:$0xf]
        %v697 = vld [vmem:[#allocation14 + $0x24] sm:$0xf]
        %v698 = vld [vmem:[#allocation14 + $0x28] sm:$0xf]
        %v699 = vld [vmem:[#allocation14 + $0x2c] sm:$0xf]
        %v700 = vld [vmem:[#allocation14 + $0x30] sm:$0xf]
        %v701 = vld [vmem:[#allocation14 + $0x34] sm:$0xf]
        %v702 = vld [vmem:[#allocation14 + $0x38] sm:$0xf]
        %v703 = vld [vmem:[#allocation14 + $0x3c] sm:$0xf]
        %v704 = vld [vmem:[%s7] sm:$0x1]
        %v706 = vlaneseq
        %v707 = vshrl.u32 %v706, 7
        %v708 = vsub.s32 0, %v707
        %v709 = vrot.slane %v704, %v708
        %v727 = vunpack.c.l.b16 %v688
        %v728 = vunpack.c.l.b16 %v689
        %v729 = vunpack.c.l.b16 %v690
        %v730 = vunpack.c.l.b16 %v691
        %v731 = vunpack.c.l.b16 %v692
        %v732 = vunpack.c.l.b16 %v693
        %v733 = vunpack.c.l.b16 %v694
        %v734 = vunpack.c.l.b16 %v695
        %v735 = vunpack.c.l.b16 %v696
        %v736 = vunpack.c.l.b16 %v697
        %v737 = vunpack.c.l.b16 %v698
        %v738 = vunpack.c.l.b16 %v699
        %v739 = vunpack.c.l.b16 %v700
        %v740 = vunpack.c.l.b16 %v701
        %v741 = vunpack.c.l.b16 %v702
        %v742 = vunpack.c.l.b16 %v703
        %v743 = vpack.c.b16 %v728, %v727
        %v744 = vpack.c.b16 %v730, %v729
        %v745 = vpack.c.b16 %v732, %v731
        %v746 = vpack.c.b16 %v734, %v733
        %v747 = vpack.c.b16 %v736, %v735
        %v748 = vpack.c.b16 %v738, %v737
        %v749 = vpack.c.b16 %v740, %v739
        %v750 = vpack.c.b16 %v742, %v741
        %759 = vmatprep.subr.bf16.mxu0 0
        %760 = vmatpush1.bf16.msra.mxu0 %v743
        %761 = vmatprep.subr.bf16.mxu0 0
        %762 = vmatpush1.bf16.msra.mxu0 %v744
        %763 = vmatprep.subr.bf16.mxu0 0
        %764 = vmatpush1.bf16.msra.mxu0 %v745
        %765 = vmatprep.subr.bf16.mxu0 0
        %766 = vmatpush1.bf16.msra.mxu0 %v746
        %767 = vmatprep.subr.bf16.mxu0 0
        %768 = vmatpush1.bf16.msra.mxu0 %v747
        %769 = vmatprep.subr.bf16.mxu0 0
        %770 = vmatpush1.bf16.msra.mxu0 %v748
        %771 = vmatprep.subr.bf16.mxu0 0
        %772 = vmatpush1.bf16.msra.mxu0 %v749
        %773 = vmatprep.subr.bf16.mxu0 0
        %774 = vmatpush1.bf16.msra.mxu0 %v750
        %775 = vmatprep.subr.bf16.mxu0 0
        %776 = vmatpush1.bf16.msra.mxu0 0
        %777 = vmatprep.subr.bf16.mxu0 0
        %778 = vmatpush1.bf16.msra.mxu0 0
        %779 = vmatprep.subr.bf16.mxu0 0
        %780 = vmatpush1.bf16.msra.mxu0 0
        %781 = vmatprep.subr.bf16.mxu0 0
        %782 = vmatpush1.bf16.msra.mxu0 0
        %783 = vmatprep.subr.bf16.mxu0 0
        %784 = vmatpush1.bf16.msra.mxu0 0
        %785 = vmatprep.subr.bf16.mxu0 0
        %786 = vmatpush1.bf16.msra.mxu0 0
        %787 = vmatprep.subr.bf16.mxu0 0
        %788 = vmatpush1.bf16.msra.mxu0 0
        %789 = vmatprep.subr.bf16.mxu0 0
        %790 = vmatpush1.bf16.msra.mxu0 0
        %791 = vmatprep.mubr.bf16.mxu0 0
        %792 = vmatmul.mubr.bf16.gmra.mrb[0].mxu0 %v574
        %v793 = vpop.f32.mrb[0].mxu0
        %v794 = vadd.f32 %v709, %v793
        %v795 = vpop.f32.mrb[0].mxu0
        %v796 = vpop.f32.mrb[0].mxu0
        %v797 = vpop.f32.mrb[0].mxu0
        %798 = vdwg.mxu0
        %v799 = vld [vmem:[#allocation15] sm:$0xf]
        %v800 = vld [vmem:[#allocation15 + $0x4] sm:$0xf]
        %v801 = vld [vmem:[#allocation15 + $0x8] sm:$0xf]
        %v802 = vld [vmem:[#allocation15 + $0xc] sm:$0xf]
        %v803 = vld [vmem:[#allocation15 + $0x10] sm:$0xf]
        %v804 = vld [vmem:[#allocation15 + $0x14] sm:$0xf]
        %v805 = vld [vmem:[#allocation15 + $0x18] sm:$0xf]
        %v806 = vld [vmem:[#allocation15 + $0x1c] sm:$0xf]
        %v807 = vld [vmem:[#allocation15 + $0x20] sm:$0xf]
        %v808 = vld [vmem:[#allocation15 + $0x24] sm:$0xf]
        %v809 = vld [vmem:[#allocation15 + $0x28] sm:$0xf]
        %v810 = vld [vmem:[#allocation15 + $0x2c] sm:$0xf]
        %v811 = vld [vmem:[#allocation15 + $0x30] sm:$0xf]
        %v812 = vld [vmem:[#allocation15 + $0x34] sm:$0xf]
        %v813 = vld [vmem:[#allocation15 + $0x38] sm:$0xf]
        %v814 = vld [vmem:[#allocation15 + $0x3c] sm:$0xf]
        %v815 = vld [vmem:[%s9] sm:$0x1]
        %v817 = vlaneseq
        %v818 = vshrl.u32 %v817, 7
        %v819 = vsub.s32 0, %v818
        %v820 = vrot.slane %v815, %v819
        %v838 = vunpack.c.l.b16 %v799
        %v839 = vunpack.c.l.b16 %v800
        %v840 = vunpack.c.l.b16 %v801
        %v841 = vunpack.c.l.b16 %v802
        %v842 = vunpack.c.l.b16 %v803
        %v843 = vunpack.c.l.b16 %v804
        %v844 = vunpack.c.l.b16 %v805
        %v845 = vunpack.c.l.b16 %v806
        %v846 = vunpack.c.l.b16 %v807
        %v847 = vunpack.c.l.b16 %v808
        %v848 = vunpack.c.l.b16 %v809
        %v849 = vunpack.c.l.b16 %v810
        %v850 = vunpack.c.l.b16 %v811
        %v851 = vunpack.c.l.b16 %v812
        %v852 = vunpack.c.l.b16 %v813
        %v853 = vunpack.c.l.b16 %v814
        %v854 = vpack.c.b16 %v839, %v838
        %v855 = vpack.c.b16 %v841, %v840
        %v856 = vpack.c.b16 %v843, %v842
        %v857 = vpack.c.b16 %v845, %v844
        %v858 = vpack.c.b16 %v847, %v846
        %v859 = vpack.c.b16 %v849, %v848
        %v860 = vpack.c.b16 %v851, %v850
        %v861 = vpack.c.b16 %v853, %v852
        %870 = vmatprep.subr.bf16.mxu0 0
        %871 = vmatpush1.bf16.msra.mxu0 %v854
        %872 = vmatprep.subr.bf16.mxu0 0
        %873 = vmatpush1.bf16.msra.mxu0 %v855
        %874 = vmatprep.subr.bf16.mxu0 0
        %875 = vmatpush1.bf16.msra.mxu0 %v856
        %876 = vmatprep.subr.bf16.mxu0 0
        %877 = vmatpush1.bf16.msra.mxu0 %v857
        %878 = vmatprep.subr.bf16.mxu0 0
        %879 = vmatpush1.bf16.msra.mxu0 %v858
        %880 = vmatprep.subr.bf16.mxu0 0
        %881 = vmatpush1.bf16.msra.mxu0 %v859
        %882 = vmatprep.subr.bf16.mxu0 0
        %883 = vmatpush1.bf16.msra.mxu0 %v860
        %884 = vmatprep.subr.bf16.mxu0 0
        %885 = vmatpush1.bf16.msra.mxu0 %v861
        %886 = vmatprep.subr.bf16.mxu0 0
        %887 = vmatpush1.bf16.msra.mxu0 0
        %888 = vmatprep.subr.bf16.mxu0 0
        %889 = vmatpush1.bf16.msra.mxu0 0
        %890 = vmatprep.subr.bf16.mxu0 0
        %891 = vmatpush1.bf16.msra.mxu0 0
        %892 = vmatprep.subr.bf16.mxu0 0
        %893 = vmatpush1.bf16.msra.mxu0 0
        %894 = vmatprep.subr.bf16.mxu0 0
        %895 = vmatpush1.bf16.msra.mxu0 0
        %896 = vmatprep.subr.bf16.mxu0 0
        %897 = vmatpush1.bf16.msra.mxu0 0
        %898 = vmatprep.subr.bf16.mxu0 0
        %899 = vmatpush1.bf16.msra.mxu0 0
        %900 = vmatprep.subr.bf16.mxu0 0
        %901 = vmatpush1.bf16.msra.mxu0 0
        %902 = vmatprep.mubr.bf16.mxu0 0
        %903 = vmatmul.mubr.bf16.gmra.mrb[0].mxu0 %v575
        %v904 = vpop.f32.mrb[0].mxu0
        %v905 = vadd.f32 %v820, %v904
        %v906 = vpop.f32.mrb[0].mxu0
        %v907 = vpop.f32.mrb[0].mxu0
        %v908 = vpop.f32.mrb[0].mxu0
        %909 = vdwg.mxu0
        %v910 = vpack.c.bf16 %v687, %v687
        %911 = vst [vmem:[#allocation2] sm:$0xf] %v910
        %v912 = vpack.c.bf16 %v794, %v794
        %913 = vst [vmem:[#allocation3] sm:$0xf] %v912
        %v914 = vpack.c.bf16 %v905, %v905
        %915 = vst [vmem:[#allocation4] sm:$0xf] %v914
        %v916 = vld [vmem:[%s571] sm:$0x1]
        %v917 = vld [vmem:[#allocation2] sm:$0xf]
        %v918 = vld [vmem:[#allocation3] sm:$0xf]
        %v919 = vld [vmem:[#allocation4] sm:$0xf]
        %v921 = vlaneseq
        %v922 = vshrl.u32 %v921, 7
        %v923 = vsub.s32 0, %v922
        %v924 = vrot.slane %v916, %v923
        %vm926 = vcmask 261120
        %v928 = vsel %vm926, %v917, 0
        %v931 = vsel %vm926, %v918, 0
        %933 = vmatprep.subr.bf16.mxu0 0
        %934 = vmatpush1.bf16.xpose.msra.mxu0 %v931
        %935 = vmatprep.subr.bf16.mxu0 0
        %936 = vmatpush1.bf16.xpose.msra.mxu0 0
        %937 = vmatprep.subr.bf16.mxu0 0
        %938 = vmatpush1.bf16.xpose.msra.mxu0 0
        %939 = vmatprep.subr.bf16.mxu0 0
        %940 = vmatpush1.bf16.xpose.msra.mxu0 0
        %941 = vmatprep.subr.bf16.mxu0 0
        %942 = vmatpush1.bf16.xpose.msra.mxu0 0
        %943 = vmatprep.subr.bf16.mxu0 0
        %944 = vmatpush1.bf16.xpose.msra.mxu0 0
        %945 = vmatprep.subr.bf16.mxu0 0
        %946 = vmatpush1.bf16.xpose.msra.mxu0 0
        %947 = vmatprep.subr.bf16.mxu0 0
        %948 = vmatpush1.bf16.xpose.msra.mxu0 0
        %949 = vmatprep.subr.bf16.mxu0 0
        %950 = vmatpush1.bf16.xpose.msra.mxu0 0
        %951 = vmatprep.subr.bf16.mxu0 0
        %952 = vmatpush1.bf16.xpose.msra.mxu0 0
        %953 = vmatprep.subr.bf16.mxu0 0
        %954 = vmatpush1.bf16.xpose.msra.mxu0 0
        %955 = vmatprep.subr.bf16.mxu0 0
        %956 = vmatpush1.bf16.xpose.msra.mxu0 0
        %957 = vmatprep.subr.bf16.mxu0 0
        %958 = vmatpush1.bf16.xpose.msra.mxu0 0
        %959 = vmatprep.subr.bf16.mxu0 0
        %960 = vmatpush1.bf16.xpose.msra.mxu0 0
        %961 = vmatprep.subr.bf16.mxu0 0
        %962 = vmatpush1.bf16.xpose.msra.mxu0 0
        %963 = vmatprep.subr.bf16.mxu0 0
        %964 = vmatpush1.bf16.xpose.msra.mxu0 0
        %965 = vmatprep.mubr.bf16.mxu0 0
        %966 = vmatmul.mubr.bf16.gmra.mrb[0].mxu0 %v928
        %v967 = vpop.f32.mrb[0].mxu0
        %v968 = vadd.f32 %v924, %v967
        %v969 = vpop.f32.mrb[0].mxu0
        %v970 = vpop.f32.mrb[0].mxu0
        %v971 = vpop.f32.mrb[0].mxu0
        %972 = vdwg.mxu0
        %vm973 = vcmask 64512
        %v974 = vsel %vm973, %v968, -inf
        %975 = vmax.xlane.f32.xlu0 %v974
        %v976 = vpop.xlane.xlu0 %975
        %v977 = vsub.f32 %v968, %v976
        %v978 = vmul.f32 %v977, 1.442695
        %v979 = vpow.pop %v978
        %v980 = vsel %vm973, %v979, 0.0
        %981 = vadd.xlane.f32.xlu0 %v980
        %v982 = vpop.xlane.xlu0 %981
        %v983 = vpack.c.bf16 %v979, %v979
        %v985 = vsel %vm973, %v983, 0
        %vm987 = vcmask 1043456
        %v989 = vsel %vm987, %v919, 0
        %991 = vmatprep.subr.bf16.mxu0 0
        %992 = vmatpush1.bf16.msra.mxu0 %v989
        %993 = vmatprep.subr.bf16.mxu0 0
        %994 = vmatpush1.bf16.msra.mxu0 0
        %995 = vmatprep.subr.bf16.mxu0 0
        %996 = vmatpush1.bf16.msra.mxu0 0
        %997 = vmatprep.subr.bf16.mxu0 0
        %998 = vmatpush1.bf16.msra.mxu0 0
        %999 = vmatprep.subr.bf16.mxu0 0
        %1000 = vmatpush1.bf16.msra.mxu0 0
        %1001 = vmatprep.subr.bf16.mxu0 0
        %1002 = vmatpush1.bf16.msra.mxu0 0
        %1003 = vmatprep.subr.bf16.mxu0 0
        %1004 = vmatpush1.bf16.msra.mxu0 0
        %1005 = vmatprep.subr.bf16.mxu0 0
        %1006 = vmatpush1.bf16.msra.mxu0 0
        %1007 = vmatprep.subr.bf16.mxu0 0
        %1008 = vmatpush1.bf16.msra.mxu0 0
        %1009 = vmatprep.subr.bf16.mxu0 0
        %1010 = vmatpush1.bf16.msra.mxu0 0
        %1011 = vmatprep.subr.bf16.mxu0 0
        %1012 = vmatpush1.bf16.msra.mxu0 0
        %1013 = vmatprep.subr.bf16.mxu0 0
        %1014 = vmatpush1.bf16.msra.mxu0 0
        %1015 = vmatprep.subr.bf16.mxu0 0
        %1016 = vmatpush1.bf16.msra.mxu0 0
        %1017 = vmatprep.subr.bf16.mxu0 0
        %1018 = vmatpush1.bf16.msra.mxu0 0
        %1019 = vmatprep.subr.bf16.mxu0 0
        %1020 = vmatpush1.bf16.msra.mxu0 0
        %1021 = vmatprep.subr.bf16.mxu0 0
        %1022 = vmatpush1.bf16.msra.mxu0 0
        %1023 = vmatprep.mubr.bf16.mxu0 0
        %1024 = vmatmul.mubr.bf16.gmra.mrb[0].mxu0 %v985
        %v1025 = vpop.f32.mrb[0].mxu0
        %v1026 = vadd.f32 0.0, %v1025
        %v1027 = vpop.f32.mrb[0].mxu0
        %v1028 = vpop.f32.mrb[0].mxu0
        %v1029 = vpop.f32.mrb[0].mxu0
        %1030 = vdwg.mxu0
        %v1031 = vrcp.pop %v982
        %v1032 = vmul.f32 %v1026, %v1031
        %v1033 = vpack.c.bf16 %v1032, %v1032
        %vm1034 = vcmask 257024
        %1035 = vst.msk [vmem:[#allocation5] sm:$0xf] %vm1034, %v1033
        %v1036 = vld [vmem:[#allocation2] sm:$0xf]
        %v1037 = vld [vmem:[#allocation3] sm:$0xf]
        %v1038 = vld [vmem:[#allocation4] sm:$0xf]
        %v1040 = vunpack.c.l.b16 %v1036
        %v1041 = vpack.c.b16 %v1040, %v1040
        %1042 = vrot.lane.b32.xlu0 %v1041, 96
        %v1043 = vpop.permute.xlu0 %1042
        %v1045 = vunpack.c.l.b16 %v1037
        %v1046 = vpack.c.b16 %v1045, %v1045
        %1047 = vrot.lane.b32.xlu0 %v1046, 96
        %v1048 = vpop.permute.xlu0 %1047
        %v1050 = vsel %vm926, %v1043, 0
        %v1053 = vsel %vm926, %v1048, 0
        %1055 = vmatprep.subr.bf16.mxu0 0
        %1056 = vmatpush1.bf16.xpose.msra.mxu0 %v1053
        %1057 = vmatprep.subr.bf16.mxu0 0
        %1058 = vmatpush1.bf16.xpose.msra.mxu0 0
        %1059 = vmatprep.subr.bf16.mxu0 0
        %1060 = vmatpush1.bf16.xpose.msra.mxu0 0
        %1061 = vmatprep.subr.bf16.mxu0 0
        %1062 = vmatpush1.bf16.xpose.msra.mxu0 0
        %1063 = vmatprep.subr.bf16.mxu0 0
        %1064 = vmatpush1.bf16.xpose.msra.mxu0 0
        %1065 = vmatprep.subr.bf16.mxu0 0
        %1066 = vmatpush1.bf16.xpose.msra.mxu0 0
        %1067 = vmatprep.subr.bf16.mxu0 0
        %1068 = vmatpush1.bf16.xpose.msra.mxu0 0
        %1069 = vmatprep.subr.bf16.mxu0 0
        %1070 = vmatpush1.bf16.xpose.msra.mxu0 0
        %1071 = vmatprep.subr.bf16.mxu0 0
        %1072 = vmatpush1.bf16.xpose.msra.mxu0 0
        %1073 = vmatprep.subr.bf16.mxu0 0
        %1074 = vmatpush1.bf16.xpose.msra.mxu0 0
        %1075 = vmatprep.subr.bf16.mxu0 0
        %1076 = vmatpush1.bf16.xpose.msra.mxu0 0
        %1077 = vmatprep.subr.bf16.mxu0 0
        %1078 = vmatpush1.bf16.xpose.msra.mxu0 0
        %1079 = vmatprep.subr.bf16.mxu0 0
        %1080 = vmatpush1.bf16.xpose.msra.mxu0 0
        %1081 = vmatprep.subr.bf16.mxu0 0
        %1082 = vmatpush1.bf16.xpose.msra.mxu0 0
        %1083 = vmatprep.subr.bf16.mxu0 0
        %1084 = vmatpush1.bf16.xpose.msra.mxu0 0
        %1085 = vmatprep.subr.bf16.mxu0 0
        %1086 = vmatpush1.bf16.xpose.msra.mxu0 0
        %1087 = vmatprep.mubr.bf16.mxu0 0
        %1088 = vmatmul.mubr.bf16.gmra.mrb[0].mxu0 %v1050
        %v1089 = vpop.f32.mrb[0].mxu0
        %v1090 = vadd.f32 %v924, %v1089
        %v1091 = vpop.f32.mrb[0].mxu0
        %v1092 = vpop.f32.mrb[0].mxu0
        %v1093 = vpop.f32.mrb[0].mxu0
        %1094 = vdwg.mxu0
        %v1095 = vsel %vm973, %v1090, -inf
        %1096 = vmax.xlane.f32.xlu0 %v1095
        %v1097 = vpop.xlane.xlu0 %1096
        %v1098 = vsub.f32 %v1090, %v1097
        %v1099 = vmul.f32 %v1098, 1.442695
        %v1100 = vpow.pop %v1099
        %v1101 = vsel %vm973, %v1100, 0.0
        %1102 = vadd.xlane.f32.xlu0 %v1101
        %v1103 = vpop.xlane.xlu0 %1102
        %v1104 = vpack.c.bf16 %v1100, %v1100
        %v1106 = vunpack.c.l.b16 %v1038
        %v1107 = vpack.c.b16 %v1106, %v1106
        %1108 = vrot.lane.b32.xlu0 %v1107, 96
        %v1109 = vpop.permute.xlu0 %1108
        %v1111 = vsel %vm973, %v1104, 0
        %v1114 = vsel %vm987, %v1109, 0
        %1116 = vmatprep.subr.bf16.mxu0 0
        %1117 = vmatpush1.bf16.msra.mxu0 %v1114
        %1118 = vmatprep.subr.bf16.mxu0 0
        %1119 = vmatpush1.bf16.msra.mxu0 0
        %1120 = vmatprep.subr.bf16.mxu0 0
        %1121 = vmatpush1.bf16.msra.mxu0 0
        %1122 = vmatprep.subr.bf16.mxu0 0
        %1123 = vmatpush1.bf16.msra.mxu0 0
        %1124 = vmatprep.subr.bf16.mxu0 0
        %1125 = vmatpush1.bf16.msra.mxu0 0
        %1126 = vmatprep.subr.bf16.mxu0 0
        %1127 = vmatpush1.bf16.msra.mxu0 0
        %1128 = vmatprep.subr.bf16.mxu0 0
        %1129 = vmatpush1.bf16.msra.mxu0 0
        %1130 = vmatprep.subr.bf16.mxu0 0
        %1131 = vmatpush1.bf16.msra.mxu0 0
        %1132 = vmatprep.subr.bf16.mxu0 0
        %1133 = vmatpush1.bf16.msra.mxu0 0
        %1134 = vmatprep.subr.bf16.mxu0 0
        %1135 = vmatpush1.bf16.msra.mxu0 0
        %1136 = vmatprep.subr.bf16.mxu0 0
        %1137 = vmatpush1.bf16.msra.mxu0 0
        %1138 = vmatprep.subr.bf16.mxu0 0
        %1139 = vmatpush1.bf16.msra.mxu0 0
        %1140 = vmatprep.subr.bf16.mxu0 0
        %1141 = vmatpush1.bf16.msra.mxu0 0
        %1142 = vmatprep.subr.bf16.mxu0 0
        %1143 = vmatpush1.bf16.msra.mxu0 0
        %1144 = vmatprep.subr.bf16.mxu0 0
        %1145 = vmatpush1.bf16.msra.mxu0 0
        %1146 = vmatprep.subr.bf16.mxu0 0
        %1147 = vmatpush1.bf16.msra.mxu0 0
        %1148 = vmatprep.mubr.bf16.mxu0 0
        %1149 = vmatmul.mubr.bf16.gmra.mrb[0].mxu0 %v1111
        %v1150 = vpop.f32.mrb[0].mxu0
        %v1151 = vadd.f32 0.0, %v1150
        %v1152 = vpop.f32.mrb[0].mxu0
        %v1153 = vpop.f32.mrb[0].mxu0
        %v1154 = vpop.f32.mrb[0].mxu0
        %1155 = vdwg.mxu0
        %v1156 = vrcp.pop %v1103
        %v1157 = vmul.f32 %v1151, %v1156
        %v1158 = vpack.c.bf16 %v1157, %v1157
        %v1160 = vunpack.c.l.b16 %v1158
        %v1161 = vpack.c.b16 %v1160, %v1160
        %1162 = vrot.lane.b32.xlu0 %v1161, 32
        %v1163 = vpop.permute.xlu0 %1162
        %vm1165 = vcmask 519424
        %1166 = vst.msk [vmem:[#allocation5] sm:$0xf] %vm1165, %v1163
        %v1167 = vld [vmem:[#allocation2] sm:$0xf]
        %v1168 = vld [vmem:[#allocation3] sm:$0xf]
        %v1169 = vld [vmem:[#allocation4] sm:$0xf]
        %v1171 = vunpack.c.l.b16 %v1167
        %v1172 = vpack.c.b16 %v1171, %v1171
        %1173 = vrot.lane.b32.xlu0 %v1172, 64
        %v1174 = vpop.permute.xlu0 %1173
        %v1176 = vunpack.c.l.b16 %v1168
        %v1177 = vpack.c.b16 %v1176, %v1176
        %1178 = vrot.lane.b32.xlu0 %v1177, 64
        %v1179 = vpop.permute.xlu0 %1178
        %v1181 = vsel %vm926, %v1174, 0
        %v1184 = vsel %vm926, %v1179, 0
        %1186 = vmatprep.subr.bf16.mxu0 0
        %1187 = vmatpush1.bf16.xpose.msra.mxu0 %v1184
        %1188 = vmatprep.subr.bf16.mxu0 0
        %1189 = vmatpush1.bf16.xpose.msra.mxu0 0
        %1190 = vmatprep.subr.bf16.mxu0 0
        %1191 = vmatpush1.bf16.xpose.msra.mxu0 0
        %1192 = vmatprep.subr.bf16.mxu0 0
        %1193 = vmatpush1.bf16.xpose.msra.mxu0 0
        %1194 = vmatprep.subr.bf16.mxu0 0
        %1195 = vmatpush1.bf16.xpose.msra.mxu0 0
        %1196 = vmatprep.subr.bf16.mxu0 0
        %1197 = vmatpush1.bf16.xpose.msra.mxu0 0
        %1198 = vmatprep.subr.bf16.mxu0 0
        %1199 = vmatpush1.bf16.xpose.msra.mxu0 0
        %1200 = vmatprep.subr.bf16.mxu0 0
        %1201 = vmatpush1.bf16.xpose.msra.mxu0 0
        %1202 = vmatprep.subr.bf16.mxu0 0
        %1203 = vmatpush1.bf16.xpose.msra.mxu0 0
        %1204 = vmatprep.subr.bf16.mxu0 0
        %1205 = vmatpush1.bf16.xpose.msra.mxu0 0
        %1206 = vmatprep.subr.bf16.mxu0 0
        %1207 = vmatpush1.bf16.xpose.msra.mxu0 0
        %1208 = vmatprep.subr.bf16.mxu0 0
        %1209 = vmatpush1.bf16.xpose.msra.mxu0 0
        %1210 = vmatprep.subr.bf16.mxu0 0
        %1211 = vmatpush1.bf16.xpose.msra.mxu0 0
        %1212 = vmatprep.subr.bf16.mxu0 0
        %1213 = vmatpush1.bf16.xpose.msra.mxu0 0
        %1214 = vmatprep.subr.bf16.mxu0 0
        %1215 = vmatpush1.bf16.xpose.msra.mxu0 0
        %1216 = vmatprep.subr.bf16.mxu0 0
        %1217 = vmatpush1.bf16.xpose.msra.mxu0 0
        %1218 = vmatprep.mubr.bf16.mxu0 0
        %1219 = vmatmul.mubr.bf16.gmra.mrb[0].mxu0 %v1181
        %v1220 = vpop.f32.mrb[0].mxu0
        %v1221 = vadd.f32 %v924, %v1220
        %v1222 = vpop.f32.mrb[0].mxu0
        %v1223 = vpop.f32.mrb[0].mxu0
        %v1224 = vpop.f32.mrb[0].mxu0
        %1225 = vdwg.mxu0
        %v1226 = vsel %vm973, %v1221, -inf
        %1227 = vmax.xlane.f32.xlu0 %v1226
        %v1228 = vpop.xlane.xlu0 %1227
        %v1229 = vsub.f32 %v1221, %v1228
        %v1230 = vmul.f32 %v1229, 1.442695
        %v1231 = vpow.pop %v1230
        %v1232 = vsel %vm973, %v1231, 0.0
        %1233 = vadd.xlane.f32.xlu0 %v1232
        %v1234 = vpop.xlane.xlu0 %1233
        %v1235 = vpack.c.bf16 %v1231, %v1231
        %v1237 = vunpack.c.l.b16 %v1169
        %v1238 = vpack.c.b16 %v1237, %v1237
        %1239 = vrot.lane.b32.xlu0 %v1238, 64
        %v1240 = vpop.permute.xlu0 %1239
        %v1242 = vsel %vm973, %v1235, 0
        %v1245 = vsel %vm987, %v1240, 0
        %1247 = vmatprep.subr.bf16.mxu0 0
        %1248 = vmatpush1.bf16.msra.mxu0 %v1245
        %1249 = vmatprep.subr.bf16.mxu0 0
        %1250 = vmatpush1.bf16.msra.mxu0 0
        %1251 = vmatprep.subr.bf16.mxu0 0
        %1252 = vmatpush1.bf16.msra.mxu0 0
        %1253 = vmatprep.subr.bf16.mxu0 0
        %1254 = vmatpush1.bf16.msra.mxu0 0
        %1255 = vmatprep.subr.bf16.mxu0 0
        %1256 = vmatpush1.bf16.msra.mxu0 0
        %1257 = vmatprep.subr.bf16.mxu0 0
        %1258 = vmatpush1.bf16.msra.mxu0 0
        %1259 = vmatprep.subr.bf16.mxu0 0
        %1260 = vmatpush1.bf16.msra.mxu0 0
        %1261 = vmatprep.subr.bf16.mxu0 0
        %1262 = vmatpush1.bf16.msra.mxu0 0
        %1263 = vmatprep.subr.bf16.mxu0 0
        %1264 = vmatpush1.bf16.msra.mxu0 0
        %1265 = vmatprep.subr.bf16.mxu0 0
        %1266 = vmatpush1.bf16.msra.mxu0 0
        %1267 = vmatprep.subr.bf16.mxu0 0
        %1268 = vmatpush1.bf16.msra.mxu0 0
        %1269 = vmatprep.subr.bf16.mxu0 0
        %1270 = vmatpush1.bf16.msra.mxu0 0
        %1271 = vmatprep.subr.bf16.mxu0 0
        %1272 = vmatpush1.bf16.msra.mxu0 0
        %1273 = vmatprep.subr.bf16.mxu0 0
        %1274 = vmatpush1.bf16.msra.mxu0 0
        %1275 = vmatprep.subr.bf16.mxu0 0
        %1276 = vmatpush1.bf16.msra.mxu0 0
        %1277 = vmatprep.subr.bf16.mxu0 0
        %1278 = vmatpush1.bf16.msra.mxu0 0
        %1279 = vmatprep.mubr.bf16.mxu0 0
        %1280 = vmatmul.mubr.bf16.gmra.mrb[0].mxu0 %v1242
        %v1281 = vpop.f32.mrb[0].mxu0
        %v1282 = vadd.f32 0.0, %v1281
        %v1283 = vpop.f32.mrb[0].mxu0
        %v1284 = vpop.f32.mrb[0].mxu0
        %v1285 = vpop.f32.mrb[0].mxu0
        %1286 = vdwg.mxu0
        %v1287 = vrcp.pop %v1234
        %v1288 = vmul.f32 %v1282, %v1287
        %v1289 = vpack.c.bf16 %v1288, %v1288
        %v1291 = vunpack.c.l.b16 %v1289
        %v1292 = vpack.c.b16 %v1291, %v1291
        %1293 = vrot.lane.b32.xlu0 %v1292, 64
        %v1294 = vpop.permute.xlu0 %1293
        %vm1296 = vcmask 781824
        %1297 = vst.msk [vmem:[#allocation5] sm:$0xf] %vm1296, %v1294
        %v1298 = vld [vmem:[#allocation2] sm:$0xf]
        %v1299 = vld [vmem:[#allocation3] sm:$0xf]
        %v1300 = vld [vmem:[#allocation4] sm:$0xf]
        %v1302 = vunpack.c.l.b16 %v1298
        %v1303 = vpack.c.b16 %v1302, %v1302
        %1304 = vrot.lane.b32.xlu0 %v1303, 32
        %v1305 = vpop.permute.xlu0 %1304
        %v1307 = vunpack.c.l.b16 %v1299
        %v1308 = vpack.c.b16 %v1307, %v1307
        %1309 = vrot.lane.b32.xlu0 %v1308, 32
        %v1310 = vpop.permute.xlu0 %1309
        %v1312 = vsel %vm926, %v1305, 0
        %v1315 = vsel %vm926, %v1310, 0
        %1317 = vmatprep.subr.bf16.mxu0 0
        %1318 = vmatpush1.bf16.xpose.msra.mxu0 %v1315
        %1319 = vmatprep.subr.bf16.mxu0 0
        %1320 = vmatpush1.bf16.xpose.msra.mxu0 0
        %1321 = vmatprep.subr.bf16.mxu0 0
        %1322 = vmatpush1.bf16.xpose.msra.mxu0 0
        %1323 = vmatprep.subr.bf16.mxu0 0
        %1324 = vmatpush1.bf16.xpose.msra.mxu0 0
        %1325 = vmatprep.subr.bf16.mxu0 0
        %1326 = vmatpush1.bf16.xpose.msra.mxu0 0
        %1327 = vmatprep.subr.bf16.mxu0 0
        %1328 = vmatpush1.bf16.xpose.msra.mxu0 0
        %1329 = vmatprep.subr.bf16.mxu0 0
        %1330 = vmatpush1.bf16.xpose.msra.mxu0 0
        %1331 = vmatprep.subr.bf16.mxu0 0
        %1332 = vmatpush1.bf16.xpose.msra.mxu0 0
        %1333 = vmatprep.subr.bf16.mxu0 0
        %1334 = vmatpush1.bf16.xpose.msra.mxu0 0
        %1335 = vmatprep.subr.bf16.mxu0 0
        %1336 = vmatpush1.bf16.xpose.msra.mxu0 0
        %1337 = vmatprep.subr.bf16.mxu0 0
        %1338 = vmatpush1.bf16.xpose.msra.mxu0 0
        %1339 = vmatprep.subr.bf16.mxu0 0
        %1340 = vmatpush1.bf16.xpose.msra.mxu0 0
        %1341 = vmatprep.subr.bf16.mxu0 0
        %1342 = vmatpush1.bf16.xpose.msra.mxu0 0
        %1343 = vmatprep.subr.bf16.mxu0 0
        %1344 = vmatpush1.bf16.xpose.msra.mxu0 0
        %1345 = vmatprep.subr.bf16.mxu0 0
        %1346 = vmatpush1.bf16.xpose.msra.mxu0 0
        %1347 = vmatprep.subr.bf16.mxu0 0
        %1348 = vmatpush1.bf16.xpose.msra.mxu0 0
        %1349 = vmatprep.mubr.bf16.mxu0 0
        %1350 = vmatmul.mubr.bf16.gmra.mrb[0].mxu0 %v1312
        %v1351 = vpop.f32.mrb[0].mxu0
        %v1352 = vadd.f32 %v924, %v1351
        %v1353 = vpop.f32.mrb[0].mxu0
        %v1354 = vpop.f32.mrb[0].mxu0
        %v1355 = vpop.f32.mrb[0].mxu0
        %1356 = vdwg.mxu0
        %v1357 = vsel %vm973, %v1352, -inf
        %1358 = vmax.xlane.f32.xlu0 %v1357
        %v1359 = vpop.xlane.xlu0 %1358
        %v1360 = vsub.f32 %v1352, %v1359
        %v1361 = vmul.f32 %v1360, 1.442695
        %v1362 = vpow.pop %v1361
        %v1363 = vsel %vm973, %v1362, 0.0
        %1364 = vadd.xlane.f32.xlu0 %v1363
        %v1365 = vpop.xlane.xlu0 %1364
        %v1366 = vpack.c.bf16 %v1362, %v1362
        %v1368 = vunpack.c.l.b16 %v1300
        %v1369 = vpack.c.b16 %v1368, %v1368
        %1370 = vrot.lane.b32.xlu0 %v1369, 32
        %v1371 = vpop.permute.xlu0 %1370
        %v1373 = vsel %vm973, %v1366, 0
        %v1376 = vsel %vm987, %v1371, 0
        %1378 = vmatprep.subr.bf16.mxu0 0
        %1379 = vmatpush1.bf16.msra.mxu0 %v1376
        %1380 = vmatprep.subr.bf16.mxu0 0
        %1381 = vmatpush1.bf16.msra.mxu0 0
        %1382 = vmatprep.subr.bf16.mxu0 0
        %1383 = vmatpush1.bf16.msra.mxu0 0
        %1384 = vmatprep.subr.bf16.mxu0 0
        %1385 = vmatpush1.bf16.msra.mxu0 0
        %1386 = vmatprep.subr.bf16.mxu0 0
        %1387 = vmatpush1.bf16.msra.mxu0 0
        %1388 = vmatprep.subr.bf16.mxu0 0
        %1389 = vmatpush1.bf16.msra.mxu0 0
        %1390 = vmatprep.subr.bf16.mxu0 0
        %1391 = vmatpush1.bf16.msra.mxu0 0
        %1392 = vmatprep.subr.bf16.mxu0 0
        %1393 = vmatpush1.bf16.msra.mxu0 0
        %1394 = vmatprep.subr.bf16.mxu0 0
        %1395 = vmatpush1.bf16.msra.mxu0 0
        %1396 = vmatprep.subr.bf16.mxu0 0
        %1397 = vmatpush1.bf16.msra.mxu0 0
        %1398 = vmatprep.subr.bf16.mxu0 0
        %1399 = vmatpush1.bf16.msra.mxu0 0
        %1400 = vmatprep.subr.bf16.mxu0 0
        %1401 = vmatpush1.bf16.msra.mxu0 0
        %1402 = vmatprep.subr.bf16.mxu0 0
        %1403 = vmatpush1.bf16.msra.mxu0 0
        %1404 = vmatprep.subr.bf16.mxu0 0
        %1405 = vmatpush1.bf16.msra.mxu0 0
        %1406 = vmatprep.subr.bf16.mxu0 0
        %1407 = vmatpush1.bf16.msra.mxu0 0
        %1408 = vmatprep.subr.bf16.mxu0 0
        %1409 = vmatpush1.bf16.msra.mxu0 0
        %1410 = vmatprep.mubr.bf16.mxu0 0
        %1411 = vmatmul.mubr.bf16.gmra.mrb[0].mxu0 %v1373
        %v1412 = vpop.f32.mrb[0].mxu0
        %v1413 = vadd.f32 0.0, %v1412
        %v1414 = vpop.f32.mrb[0].mxu0
        %v1415 = vpop.f32.mrb[0].mxu0
        %v1416 = vpop.f32.mrb[0].mxu0
        %1417 = vdwg.mxu0
        %v1418 = vrcp.pop %v1365
        %v1419 = vmul.f32 %v1413, %v1418
        %v1420 = vpack.c.bf16 %v1419, %v1419
        %v1422 = vunpack.c.l.b16 %v1420
        %v1423 = vpack.c.b16 %v1422, %v1422
        %1424 = vrot.lane.b32.xlu0 %v1423, 96
        %v1425 = vpop.permute.xlu0 %1424
        %vm1427 = vcmask 1044224
        %1428 = vst.msk [vmem:[#allocation5] sm:$0xf] %vm1427, %v1425
        %v1429 = vld [vmem:[#allocation5] sm:$0xf]
        %v1430 = vld [vmem:[#allocation17] sm:$0xf]
        %v1431 = vld [vmem:[#allocation17 + $0x4] sm:$0xf]
        %v1432 = vld [vmem:[#allocation17 + $0x8] sm:$0xf]
        %v1433 = vld [vmem:[#allocation17 + $0xc] sm:$0xf]
        %v1434 = vld [vmem:[#allocation17 + $0x10] sm:$0xf]
        %v1435 = vld [vmem:[#allocation17 + $0x14] sm:$0xf]
        %v1436 = vld [vmem:[#allocation17 + $0x18] sm:$0xf]
        %v1437 = vld [vmem:[#allocation17 + $0x1c] sm:$0xf]
        %v1438 = vld [vmem:[#allocation17 + $0x20] sm:$0xf]
        %v1439 = vld [vmem:[#allocation17 + $0x24] sm:$0xf]
        %v1440 = vld [vmem:[#allocation17 + $0x28] sm:$0xf]
        %v1441 = vld [vmem:[#allocation17 + $0x2c] sm:$0xf]
        %v1442 = vld [vmem:[#allocation17 + $0x30] sm:$0xf]
        %v1443 = vld [vmem:[#allocation17 + $0x34] sm:$0xf]
        %v1444 = vld [vmem:[#allocation17 + $0x38] sm:$0xf]
        %v1445 = vld [vmem:[#allocation17 + $0x3c] sm:$0xf]
        %v1446 = vld [vmem:[%s11] sm:$0x1]
        %v1448 = vlaneseq
        %v1449 = vshrl.u32 %v1448, 7
        %v1450 = vsub.s32 0, %v1449
        %v1451 = vrot.slane %v1446, %v1450
        %v1469 = vunpack.c.l.b16 %v1430
        %v1470 = vunpack.c.l.b16 %v1431
        %v1471 = vunpack.c.l.b16 %v1432
        %v1472 = vunpack.c.l.b16 %v1433
        %v1473 = vunpack.c.l.b16 %v1434
        %v1474 = vunpack.c.l.b16 %v1435
        %v1475 = vunpack.c.l.b16 %v1436
        %v1476 = vunpack.c.l.b16 %v1437
        %v1477 = vunpack.c.l.b16 %v1438
        %v1478 = vunpack.c.l.b16 %v1439
        %v1479 = vunpack.c.l.b16 %v1440
        %v1480 = vunpack.c.l.b16 %v1441
        %v1481 = vunpack.c.l.b16 %v1442
        %v1482 = vunpack.c.l.b16 %v1443
        %v1483 = vunpack.c.l.b16 %v1444
        %v1484 = vunpack.c.l.b16 %v1445
        %v1485 = vpack.c.b16 %v1470, %v1469
        %v1486 = vpack.c.b16 %v1472, %v1471
        %v1487 = vpack.c.b16 %v1474, %v1473
        %v1488 = vpack.c.b16 %v1476, %v1475
        %v1489 = vpack.c.b16 %v1478, %v1477
        %v1490 = vpack.c.b16 %v1480, %v1479
        %v1491 = vpack.c.b16 %v1482, %v1481
        %v1492 = vpack.c.b16 %v1484, %v1483
        %1501 = vmatprep.subr.bf16.mxu0 0
        %1502 = vmatpush1.bf16.msra.mxu0 %v1485
        %1503 = vmatprep.subr.bf16.mxu0 0
        %1504 = vmatpush1.bf16.msra.mxu0 %v1486
        %1505 = vmatprep.subr.bf16.mxu0 0
        %1506 = vmatpush1.bf16.msra.mxu0 %v1487
        %1507 = vmatprep.subr.bf16.mxu0 0
        %1508 = vmatpush1.bf16.msra.mxu0 %v1488
        %1509 = vmatprep.subr.bf16.mxu0 0
        %1510 = vmatpush1.bf16.msra.mxu0 %v1489
        %1511 = vmatprep.subr.bf16.mxu0 0
        %1512 = vmatpush1.bf16.msra.mxu0 %v1490
        %1513 = vmatprep.subr.bf16.mxu0 0
        %1514 = vmatpush1.bf16.msra.mxu0 %v1491
        %1515 = vmatprep.subr.bf16.mxu0 0
        %1516 = vmatpush1.bf16.msra.mxu0 %v1492
        %1517 = vmatprep.subr.bf16.mxu0 0
        %1518 = vmatpush1.bf16.msra.mxu0 0
        %1519 = vmatprep.subr.bf16.mxu0 0
        %1520 = vmatpush1.bf16.msra.mxu0 0
        %1521 = vmatprep.subr.bf16.mxu0 0
        %1522 = vmatpush1.bf16.msra.mxu0 0
        %1523 = vmatprep.subr.bf16.mxu0 0
        %1524 = vmatpush1.bf16.msra.mxu0 0
        %1525 = vmatprep.subr.bf16.mxu0 0
        %1526 = vmatpush1.bf16.msra.mxu0 0
        %1527 = vmatprep.subr.bf16.mxu0 0
        %1528 = vmatpush1.bf16.msra.mxu0 0
        %1529 = vmatprep.subr.bf16.mxu0 0
        %1530 = vmatpush1.bf16.msra.mxu0 0
        %1531 = vmatprep.subr.bf16.mxu0 0
        %1532 = vmatpush1.bf16.msra.mxu0 0
        %1533 = vmatprep.mubr.bf16.mxu0 0
        %1534 = vmatmul.mubr.bf16.gmra.mrb[0].mxu0 %v1429
        %v1535 = vpop.f32.mrb[0].mxu0
        %v1536 = vadd.f32 %v1451, %v1535
        %v1537 = vpop.f32.mrb[0].mxu0
        %v1538 = vpop.f32.mrb[0].mxu0
        %v1539 = vpop.f32.mrb[0].mxu0
        %1540 = vdwg.mxu0
        %1541 = vst [vmem:[%s568] sm:$0xff] %v1536
        %s1542 = sand.u32 %s314, 1
        %s1543 = scalar_lea.sflag [#allocation8], %s1542
        %s1544 = sand.u32 %s314, 1
        %s1545 = smul.addr %s1544, 8
        %s1546 = scalar_lea.vmem [#allocation18], %s1545
        // Predicated region
        $region97: #{tpu_custom_call.1} parent=67 // pred_check
          %p1547 = pneg %p324
        $region98: #{tpu_custom_call.1} parent=67 // pred_check_branch
          %1549 = sbr.rel (%p1547) target = $region100
        $region99: #{tpu_custom_call.1} parent=67 // pred_region
          %s1551 = ssub.s32 128, 128
          %1552 = vsyncadd %s1543, %s1551
          %s1553 = smul.addr %s34, 128
          %s1554 = scalar_lea.hbm %s12, %s1553
          %s1556 = sshll.u32 %s1546, 4
          %s1557 = int_to_ptr.vmem [resolvable:$true] %s1556
          %1559 = dma.vmem_to_hbm [thread:$0]  %s1557, 128, %s1554, %s1543
        $region100: #{tpu_custom_call.1} parent=67 // pred_fallthru
          _
      $region68: #{tpu_custom_call.1} parent=5 // pred_fallthru
        _
      %p1560 = scmp.le.s32.totalorder 2, %s29
      // Predicated region
      $region101: #{tpu_custom_call.1} parent=5 // pred_check
        %p1561 = pneg %p1560
      $region102: #{tpu_custom_call.1} parent=5 // pred_check_branch
        %1563 = sbr.rel (%p1561) target = $region104
      $region103: #{tpu_custom_call.1} parent=5 // pred_region
        %s1564 = ssub.s32 %s29, 2
        // Predicated region
        $region105: #{tpu_custom_call.1} parent=103 // pred_check
          %p1565 = pneg %p330
        $region106: #{tpu_custom_call.1} parent=103 // pred_check_branch
          %1567 = sbr.rel (%p1565) target = $region108
        $region107: #{tpu_custom_call.1} parent=103 // pred_region
          %s1568 = sand.u32 %s315, 1
          %s1569 = scalar_lea.sflag [#allocation8], %s1568
          %s1570 = sand.u32 %s315, 1
          %s1571 = smul.addr %s1570, 8
          %s1572 = scalar_lea.vmem [#allocation18], %s1571
          %1573 = dma.done %s1569, 128
        $region108: #{tpu_custom_call.1} parent=103 // pred_fallthru
          _
      $region104: #{tpu_custom_call.1} parent=5 // pred_fallthru
        _
    $region6: #{tpu_custom_call.1} parent=1 // loop_footer
      %s33 = sadd.s32 1, %s29
    $region7: #{tpu_custom_call.1} parent=1 // loop_footer_branch
      %28 = sbr.rel target = $region3
    $region8: #{tpu_custom_call.1} parent=1 // loop_exit
      _
    %1574 = vsyncpa [#allocation7], 1
    %s1575 = scalar_lea.sflag [#allocation7], 1
    %1576 = vsyncpa %s1575, 1
    %1577 = vsyncpa [#allocation10], 1
    %s1578 = scalar_lea.sflag [#allocation10], 1
    %1579 = vsyncpa %s1578, 1
    %1580 = vsyncpa [#allocation13], 1
    %1581 = vsyncpa [#allocation16], 1
    %1582 = vsyncpa [#allocation8], 1
    %s1583 = scalar_lea.sflag [#allocation8], 1
    %1584 = vsyncpa %s1583, 1

</llo_original>
